<compile_context>
chip_gen: v7x
topology: tpu7x:2x2x1
jax: 0.10.0
libtpu: 0.0.40
codegen_flags: <defaults>
</compile_context>

<pallas_src>
import functools

import jax
import jax.numpy as jnp
import numpy as np
from jax.experimental import pallas as pl
from jax.experimental.pallas import tpu as pltpu

BN_EPS = 1e-5
LEAKY_SLOPE = 0.2
_LANE = 128
# Recompute the matmul in pass 2 while KC = 4*Cin is small; switch to a stored
# bf16 intermediate once the extra MXU FLOPs outweigh re-reading it from HBM.
_KC_RECOMPUTE_MAX = 384


def _round_up(x, m):
    return -(-x // m) * m


def _vmem_capacity_bytes():
    """Physical VMEM of the current chip (fallback: conservative 64 MiB)."""
    try:
        info = pltpu.get_tpu_info()
        cap = getattr(info, "vmem_capacity_bytes", None)
        if cap:
            return int(cap)
    except Exception:
        pass
    return 64 * 1024 * 1024


def _pick_tiling(M, KC, NCOL, out_bytes):
    """Choose (tile_m, num_splits, tiles_per_split, vmem_limit) from VMEM size."""
    cap = _vmem_capacity_bytes()
    vmem_limit = min(cap * 3 // 4, 128 * 1024 * 1024)
    budget = vmem_limit - 2 * 1024 * 1024            # headroom for compiler scratch
    tile = 1024
    while tile > 128:
        footprint = (2 * tile * KC * 2                # X: double-buffered bf16
                     + KC * NCOL * 2                  # resident bf16 weights
                     + 2 * tile * NCOL * out_bytes    # output/intermediate, dbl-buf
                     + 8 * NCOL * 4 * 4)              # stats blocks + scale/bias
        if footprint <= budget:
            break
        tile //= 2
    tile = max(16, min(tile, _round_up(M, 16)))       # don't over-pad tiny problems
    n_tiles = -(-M // tile)
    num_splits = 2 if n_tiles >= 2 else 1             # megacore-shard pass 1 (v7x)
    tiles_per_split = -(-n_tiles // num_splits)
    return tile, num_splits, tiles_per_split, int(vmem_limit)


# --------------------------- kernels ----------------------------------------

def _stats_kernel(x_ref, w_ref, sum_ref, sq_ref):
    """Pass 1 (recompute path): matmul + sublane-aligned sum / sum-of-squares."""
    @pl.when(pl.program_id(1) == 0)
    def _init():
        sum_ref[...] = jnp.zeros_like(sum_ref)
        sq_ref[...] = jnp.zeros_like(sq_ref)

    acc = jnp.dot(x_ref[...], w_ref[...], preferred_element_type=jnp.float32)
    a3 = acc.reshape(acc.shape[0] // 8, 8, acc.shape[1])
    sum_ref[...] += jnp.sum(a3, axis=0)
    sq_ref[...] += jnp.sum(a3 * a3, axis=0)


def _stats_store_kernel(x_ref, w_ref, sum_ref, sq_ref, y_ref):
    """Pass 1 (stored path): matmul, write bf16 pre-BN activations, accumulate stats."""
    @pl.when(pl.program_id(1) == 0)
    def _init():
        sum_ref[...] = jnp.zeros_like(sum_ref)
        sq_ref[...] = jnp.zeros_like(sq_ref)

    acc = jnp.dot(x_ref[...], w_ref[...], preferred_element_type=jnp.float32)
    y_ref[...] = acc.astype(y_ref.dtype)
    a3 = acc.reshape(acc.shape[0] // 8, 8, acc.shape[1])
    sum_ref[...] += jnp.sum(a3, axis=0)
    sq_ref[...] += jnp.sum(a3 * a3, axis=0)


def _apply_recompute_kernel(x_ref, w_ref, scale_ref, bias_ref, o_ref):
    """Pass 2 (recompute path): matmul + folded BN affine + LeakyReLU(0.2)."""
    acc = jnp.dot(x_ref[...], w_ref[...], preferred_element_type=jnp.float32)
    z = acc * scale_ref[...] + bias_ref[...]
    o_ref[...] = jnp.where(z >= 0, z, LEAKY_SLOPE * z).astype(o_ref.dtype)


def _apply_affine_kernel(y_ref, scale_ref, bias_ref, o_ref):
    """Pass 2 (stored path): elementwise folded BN affine + LeakyReLU(0.2)."""
    z = y_ref[...].astype(jnp.float32) * scale_ref[...] + bias_ref[...]
    o_ref[...] = jnp.where(z >= 0, z, LEAKY_SLOPE * z).astype(o_ref.dtype)


# --------------------------- wrapper -----------------------------------------

def _parity_taps(kernel, stride, padding):
    """taps[d] = [(r, k)] such that output row s*a + d receives x[a + r] * w[k]."""
    taps = []
    for d in range(stride):
        lst = []
        for k in range(kernel):
            num = d + padding - k
            if num % stride == 0:
                lst.append((num // stride, k))
        taps.append(lst)
    return taps


@functools.partial(jax.jit,
                   static_argnames=("stride", "padding", "output_padding",
                                    "store_intermediate", "channels_last"))
def conv_transpose_block(x_nchw, weight, gamma, beta, *, stride=2, padding=1,
                         output_padding=1, store_intermediate=None,
                         channels_last=False):
    """Forward of ConvTransposeBlock.

    x_nchw : (N, Cin, H, W)      float32
    weight : (Cin, Cout, K, K)   ConvTranspose2d weight (PyTorch layout)
    gamma, beta : (Cout,)        BatchNorm2d affine parameters
    returns: (N, Cout, Ho, Wo) float32 (or NHWC if channels_last=True)
    """
    N, Cin, H, W = x_nchw.shape
    Cin_w, Cout, K, _ = weight.shape
    assert Cin == Cin_w
    s = stride
    Ho = (H - 1) * s - 2 * padding + K + output_padding
    Wo = (W - 1) * s - 2 * padding + K + output_padding
    # The parity decomposition assumes every parity class is exactly H x W
    # (true for this module's K=3, padding=1, output_padding=1, stride=2).
    assert Ho == s * H and Wo == s * W, (Ho, Wo)

    # ---------- glue: parity ("sub-pixel") decomposition --------------------
    taps_h = _parity_taps(K, s, padding)
    taps_w = _parity_taps(K, s, padding)
    r_h = sorted({r for lst in taps_h for (r, _) in lst})
    r_w = sorted({r for lst in taps_w for (r, _) in lst})
    pad_lo_h, pad_hi_h = max(0, -r_h[0]), max(0, r_h[-1])
    pad_lo_w, pad_hi_w = max(0, -r_w[0]), max(0, r_w[-1])

    # Build x_mat directly in bf16 to halve the glue materialization traffic.
    x = jnp.transpose(x_nchw, (0, 2, 3, 1)).astype(jnp.bfloat16)      # NHWC
    xq = jnp.pad(x, ((0, 0), (pad_lo_h, pad_hi_h), (pad_lo_w, pad_hi_w), (0, 0)))

    patch_offsets = [(rh, rw) for rh in r_h for rw in r_w]
    patch_index = {off: i for i, off in enumerate(patch_offsets)}
    P = len(patch_offsets)
    patches = [xq[:, pad_lo_h + rh: pad_lo_h + rh + H,
                  pad_lo_w + rw: pad_lo_w + rw + W, :]
               for (rh, rw) in patch_offsets]
    x_mat = jnp.concatenate(patches, axis=-1).reshape(N * H * W, P * Cin)

    # Output columns: group-major, channel-minor; group g = dh*s + dw.
    # Pad Cout so the total output width is a multiple of 128 (lane-dense).
    G = s * s
    c_step = (_LANE // G) if (_LANE % G == 0) else _LANE
    Cpad = _round_up(Cout, c_step)
    NCOL = G * Cpad
    KC = P * Cin
    M = N * H * W

    w_mat = jnp.zeros((KC, NCOL), jnp.float32)
    for dh in range(s):
        for dw in range(s):
            g = dh * s + dw
            for (rh, kh) in taps_h[dh]:
                for (rw, kw) in taps_w[dw]:
                    pi = patch_index[(rh, rw)]
                    w_mat = w_mat.at[pi * Cin:(pi + 1) * Cin,
                                     g * Cpad: g * Cpad + Cout].add(
                        weight[:, :, kh, kw].astype(jnp.float32))
    w_mat = w_mat.astype(jnp.bfloat16)   # bf16 MXU inputs, f32 accumulation

    if store_intermediate is None:
        store_intermediate = KC > _KC_RECOMPUTE_MAX

    tile_m, num_splits, tiles_per_split, vmem_limit = _pick_tiling(M, KC, NCOL, 2)
    n_tiles = num_splits * tiles_per_split
    Mpad = n_tiles * tile_m
    if Mpad > M:
        # Zero rows contribute exactly 0 to sum and sum-of-squares.
        x_mat = jnp.pad(x_mat, ((0, Mpad - M), (0, 0)))

    matmul_flops = 2 * Mpad * KC * NCOL
    x_bytes = Mpad * KC * 2
    w_bytes = KC * NCOL * 2

    # ---------- pass 1: per-column sum / sum-of-squares (+ optional store) --
    x_spec1 = pl.BlockSpec((tile_m, KC), lambda c, t: (c * tiles_per_split + t, 0))
    w_spec1 = pl.BlockSpec((KC, NCOL), lambda c, t: (0, 0))
    stat_spec = pl.BlockSpec((8, NCOL), lambda c, t: (c, 0))
    stats_out = (jax.ShapeDtypeStruct((num_splits * 8, NCOL), jnp.float32),
                 jax.ShapeDtypeStruct((num_splits * 8, NCOL), jnp.float32))
    cparams1 = pltpu.CompilerParams(
        dimension_semantics=("parallel", "arbitrary"),
        vmem_limit_bytes=vmem_limit)

    y_raw = None
    if store_intermediate:
        y_spec1 = pl.BlockSpec((tile_m, NCOL),
                               lambda c, t: (c * tiles_per_split + t, 0))
        col_sum, col_sq, y_raw = pl.pallas_call(
            _stats_store_kernel,
            out_shape=stats_out + (jax.ShapeDtypeStruct((Mpad, NCOL), jnp.bfloat16),),
            grid_spec=pltpu.PrefetchScalarGridSpec(
                num_scalar_prefetch=0,
                grid=(num_splits, tiles_per_split),
                in_specs=[x_spec1, w_spec1],
                out_specs=[stat_spec, stat_spec, y_spec1]),
            compiler_params=cparams1,
            cost_estimate=pl.CostEstimate(
                flops=matmul_flops + 3 * Mpad * NCOL,
                transcendentals=0,
                bytes_accessed=x_bytes + w_bytes + Mpad * NCOL * 2),
        )(x_mat, w_mat)
    else:
        col_sum, col_sq = pl.pallas_call(
            _stats_kernel,
            out_shape=stats_out,
            grid_spec=pltpu.PrefetchScalarGridSpec(
                num_scalar_prefetch=0,
                grid=(num_splits, tiles_per_split),
                in_specs=[x_spec1, w_spec1],
                out_specs=[stat_spec, stat_spec]),
            compiler_params=cparams1,
            cost_estimate=pl.CostEstimate(
                flops=matmul_flops + 3 * Mpad * NCOL,
                transcendentals=0,
                bytes_accessed=x_bytes + w_bytes + 2 * num_splits * 8 * NCOL * 4),
        )(x_mat, w_mat)

    # ---------- tiny combine: fold BN into per-column scale / bias ----------
    count = jnp.float32(G * M)                       # = N * Ho * Wo
    ch_sum = col_sum.sum(axis=0).reshape(G, Cpad)[:, :Cout].sum(axis=0)
    ch_sq = col_sq.sum(axis=0).reshape(G, Cpad)[:, :Cout].sum(axis=0)
    mean = ch_sum / count
    # Biased (training-mode) variance; clamp guards E[x^2]-mean^2 cancellation.
    var = jnp.maximum(ch_sq / count - mean * mean, 0.0)
    inv_std = jax.lax.rsqrt(var + BN_EPS)
    scale_c = gamma.astype(jnp.float32) * inv_std
    bias_c = beta.astype(jnp.float32) - mean * scale_c
    scale_col = jnp.zeros((G, Cpad), jnp.float32).at[:, :Cout].set(
        scale_c).reshape(1, NCOL)
    bias_col = jnp.zeros((G, Cpad), jnp.float32).at[:, :Cout].set(
        bias_c).reshape(1, NCOL)

    # ---------- pass 2: affine + LeakyReLU (matmul recompute or elementwise) -
    sb_spec = pl.BlockSpec((1, NCOL), lambda i: (0, 0))
    row_spec = pl.BlockSpec((tile_m, NCOL), lambda i: (i, 0))
    out2d_shape = jax.ShapeDtypeStruct((Mpad, NCOL), jnp.bfloat16)
    cparams2 = pltpu.CompilerParams(
        dimension_semantics=("parallel",),
        vmem_limit_bytes=vmem_limit)

    if store_intermediate:
        y2d = pl.pallas_call(
            _apply_affine_kernel,
            out_shape=out2d_shape,
            grid_spec=pltpu.PrefetchScalarGridSpec(
                num_scalar_prefetch=0,
                grid=(n_tiles,),
                in_specs=[row_spec, sb_spec, sb_spec],
                out_specs=row_spec),
            compiler_params=cparams2,
            input_output_aliases={0: 0},     # overwrite the bf16 intermediate
            cost_estimate=pl.CostEstimate(
                flops=3 * Mpad * NCOL,
                transcendentals=0,
                bytes_accessed=2 * Mpad * NCOL * 2 + 2 * NCOL * 4),
        )(y_raw, scale_col, bias_col)
    else:
        y2d = pl.pallas_call(
            _apply_recompute_kernel,
            out_shape=out2d_shape,
            grid_spec=pltpu.PrefetchScalarGridSpec(
                num_scalar_prefetch=0,
                grid=(n_tiles,),
                in_specs=[pl.BlockSpec((tile_m, KC), lambda i: (i, 0)),
                          pl.BlockSpec((KC, NCOL), lambda i: (0, 0)),
                          sb_spec, sb_spec],
                out_specs=row_spec),
            compiler_params=cparams2,
            cost_estimate=pl.CostEstimate(
                flops=matmul_flops + 3 * Mpad * NCOL,
                transcendentals=0,
                bytes_accessed=x_bytes + w_bytes + 2 * NCOL * 4 + Mpad * NCOL * 2),
        )(x_mat, w_mat, scale_col, bias_col)

    # ---------- glue: drop padding + interleave parities (pixel shuffle) ----
    y = y2d[:M].reshape(N, H, W, s, s, Cpad)[..., :Cout]    # (N,H,W,dh,dw,Cout) bf16
    y = jnp.transpose(y, (0, 1, 3, 2, 4, 5)).reshape(N, Ho, Wo, Cout)
    if channels_last:
        return y.astype(jnp.float32)
    return jnp.transpose(y, (0, 3, 1, 2)).astype(jnp.float32)   # NCHW float32


# --------------------------- reference ---------------------------------------

def _reference(x_nchw, weight, gamma, beta, *, stride=2, padding=1,
               output_padding=1):
    """Pure-JAX reference (lax conv with lhs dilation + jnp batchnorm)."""
    x = jnp.transpose(x_nchw, (0, 2, 3, 1))
    K = weight.shape[2]
    w_hwio = jnp.transpose(weight[:, :, ::-1, ::-1], (2, 3, 0, 1))  # (K,K,Cin,Cout)
    pad_lo = K - 1 - padding
    pad_hi = K - 1 - padding + output_padding
    y = jax.lax.conv_general_dilated(
        x, w_hwio, window_strides=(1, 1),
        padding=[(pad_lo, pad_hi), (pad_lo, pad_hi)],
        lhs_dilation=(stride, stride),
        dimension_numbers=("NHWC", "HWIO", "NHWC"))
    mean = jnp.mean(y, axis=(0, 1, 2), keepdims=True)
    var = jnp.mean((y - mean) ** 2, axis=(0, 1, 2), keepdims=True)
    yh = (y - mean) * jax.lax.rsqrt(var + BN_EPS) * gamma + beta
    yh = jnp.where(yh >= 0, yh, LEAKY_SLOPE * yh)
    return jnp.transpose(yh, (0, 3, 1, 2))


if __name__ == "__main__":
    # ConvTransposeBlock(in_planes=4, planes=8, kernel_size=3, stride=2)
    N, Cin, H, W = 2, 4, 16, 16
    Cout, K, stride = 8, 3, 2

    key = jax.random.PRNGKey(0)
    k_x, k_w, k_g, k_b = jax.random.split(key, 4)
    x = jax.random.normal(k_x, (N, Cin, H, W), dtype=jnp.float32)
    # ConvTranspose2d weight shape: (in_planes, planes, K, K), no bias.
    weight = 0.1 * jax.random.normal(k_w, (Cin, Cout, K, K), dtype=jnp.float32)
    # BatchNorm2d affine params (shape (planes,)).
    gamma = 1.0 + 0.1 * jax.random.normal(k_g, (Cout,), dtype=jnp.float32)
    beta = 0.1 * jax.random.normal(k_b, (Cout,), dtype=jnp.float32)

    ref = jax.block_until_ready(
        _reference(x, weight, gamma, beta, stride=stride))

    # Default (auto) path: KC = 16 -> recompute matmul in pass 2.
    out = jax.block_until_ready(
        conv_transpose_block(x, weight, gamma, beta, stride=stride))
    assert out.shape == (N, Cout, stride * H, stride * W), out.shape
    np.testing.assert_allclose(np.asarray(out), np.asarray(ref),
                               atol=4e-2, rtol=4e-2)

    # Also exercise the stored-intermediate (large-KC) path for coverage.
    out2 = jax.block_until_ready(
        conv_transpose_block(x, weight, gamma, beta, stride=stride,
                             store_intermediate=True))
    np.testing.assert_allclose(np.asarray(out2), np.asarray(ref),
                               atol=4e-2, rtol=4e-2)

    print("KERNEL_OK")
</pallas_src>

<mosaic_0001>
module attributes {stable_mosaic.version = 11 : i64} {
  func.func @_stats_kernel(%arg0: i32, %arg1: i32, %arg2: memref<512x16xbf16, #tpu.memory_space<vmem>>, %arg3: memref<16x128xbf16, #tpu.memory_space<vmem>>, %arg4: memref<8x128xf32, #tpu.memory_space<vmem>>, %arg5: memref<8x128xf32, #tpu.memory_space<vmem>>) attributes {dimension_semantics = [#tpu.dimension_semantics<parallel>, #tpu.dimension_semantics<arbitrary>], iteration_bounds = array<i64: 1, 1>, scalar_prefetch = 0 : i64, scratch_operands = 0 : i64, tpu.core_type = #tpu.core_type<tc>, window_params = [{transform_indices = @transform_0, window_bounds = array<i64: 512, 16>}, {pipeline_mode = #tpu.pipeline_mode<synchronous>, transform_indices = @transform_1, window_bounds = array<i64: 16, 128>}, {transform_indices = @transform_2, window_bounds = array<i64: 8, 128>}, {transform_indices = @transform_3, window_bounds = array<i64: 8, 128>}]} {
    %c0_i32 = arith.constant 0 : i32
    %0 = arith.cmpi eq, %arg1, %c0_i32 : i32
    %1 = arith.extui %0 : i1 to i32
    %c0_i32_0 = arith.constant 0 : i32
    %2 = arith.cmpi ne, %1, %c0_i32_0 : i32
    scf.if %2 {
      %cst_14 = arith.constant 0.000000e+00 : f32
      %16 = vector.broadcast %cst_14 : f32 to vector<8x128xf32>
      %c0_15 = arith.constant 0 : index
      %c0_16 = arith.constant 0 : index
      %17 = vector.load %arg4[%c0_15, %c0_16] : memref<8x128xf32, #tpu.memory_space<vmem>>, vector<8x128xf32>
      tpu.vector_store %arg4[%c0_15, %c0_16], %16 {strides = array<i32>} : memref<8x128xf32, #tpu.memory_space<vmem>>, vector<8x128xf32>,
      %cst_17 = arith.constant 0.000000e+00 : f32
      %18 = vector.broadcast %cst_17 : f32 to vector<8x128xf32>
      %c0_18 = arith.constant 0 : index
      %c0_19 = arith.constant 0 : index
      %19 = vector.load %arg5[%c0_18, %c0_19] : memref<8x128xf32, #tpu.memory_space<vmem>>, vector<8x128xf32>
      tpu.vector_store %arg5[%c0_18, %c0_19], %18 {strides = array<i32>} : memref<8x128xf32, #tpu.memory_space<vmem>>, vector<8x128xf32>,
    } else {
    }
    %c0 = arith.constant 0 : index
    %c0_1 = arith.constant 0 : index
    %3 = vector.load %arg2[%c0, %c0_1] : memref<512x16xbf16, #tpu.memory_space<vmem>>, vector<512x16xbf16>
    %c0_2 = arith.constant 0 : index
    %c0_3 = arith.constant 0 : index
    %4 = vector.load %arg3[%c0_2, %c0_3] : memref<16x128xbf16, #tpu.memory_space<vmem>>, vector<16x128xbf16>
    %cst = arith.constant dense<0.000000e+00> : vector<512x128xf32>
    %5 = tpu.matmul %3, %4, %cst {dimension_numbers = #tpu.dot_dimension_numbers<[1], [0], [0], [1], [0, 0, 1, 1], [], []>} : vector<512x16xbf16>, vector<16x128xbf16>, vector<512x128xf32> -> vector<512x128xf32>
    %6 = vector.shape_cast %5 : vector<512x128xf32> to vector<64x8x128xf32>
    %c0_4 = arith.constant 0 : index
    %c0_5 = arith.constant 0 : index
    %7 = vector.load %arg4[%c0_4, %c0_5] : memref<8x128xf32, #tpu.memory_space<vmem>>, vector<8x128xf32>
    %cst_6 = arith.constant dense<0.000000e+00> : vector<8x128xf32>
    %8 = vector.multi_reduction <add>, %6, %cst_6 [0] : vector<64x8x128xf32> to vector<8x128xf32>
    %9 = arith.addf %7, %8 : vector<8x128xf32>
    %c0_7 = arith.constant 0 : index
    %c0_8 = arith.constant 0 : index
    %10 = vector.load %arg4[%c0_7, %c0_8] : memref<8x128xf32, #tpu.memory_space<vmem>>, vector<8x128xf32>
    tpu.vector_store %arg4[%c0_7, %c0_8], %9 {strides = array<i32>} : memref<8x128xf32, #tpu.memory_space<vmem>>, vector<8x128xf32>,
    %c0_9 = arith.constant 0 : index
    %c0_10 = arith.constant 0 : index
    %11 = vector.load %arg5[%c0_9, %c0_10] : memref<8x128xf32, #tpu.memory_space<vmem>>, vector<8x128xf32>
    %12 = arith.mulf %6, %6 : vector<64x8x128xf32>
    %cst_11 = arith.constant dense<0.000000e+00> : vector<8x128xf32>
    %13 = vector.multi_reduction <add>, %12, %cst_11 [0] : vector<64x8x128xf32> to vector<8x128xf32>
    %14 = arith.addf %11, %13 : vector<8x128xf32>
    %c0_12 = arith.constant 0 : index
    %c0_13 = arith.constant 0 : index
    %15 = vector.load %arg5[%c0_12, %c0_13] : memref<8x128xf32, #tpu.memory_space<vmem>>, vector<8x128xf32>
    tpu.vector_store %arg5[%c0_12, %c0_13], %14 {strides = array<i32>} : memref<8x128xf32, #tpu.memory_space<vmem>>, vector<8x128xf32>,
    return
  }
  func.func @transform_0(%arg0: i32, %arg1: i32) -> (i32, i32) {
    %c1_i32 = arith.constant 1 : i32
    %0 = arith.muli %arg0, %c1_i32 : i32
    %1 = arith.addi %0, %arg1 : i32
    %c0_i32 = arith.constant 0 : i32
    %c0_i32_0 = arith.constant 0 : i32
    return %1, %c0_i32 : i32, i32
  }
  func.func @transform_1(%arg0: i32, %arg1: i32) -> (i32, i32) {
    %c0_i32 = arith.constant 0 : i32
    %c0_i32_0 = arith.constant 0 : i32
    %c0_i32_1 = arith.constant 0 : i32
    return %c0_i32, %c0_i32_0 : i32, i32
  }
  func.func @transform_2(%arg0: i32, %arg1: i32) -> (i32, i32) {
    %c0_i32 = arith.constant 0 : i32
    %c0_i32_0 = arith.constant 0 : i32
    return %arg0, %c0_i32 : i32, i32
  }
  func.func @transform_3(%arg0: i32, %arg1: i32) -> (i32, i32) {
    %c0_i32 = arith.constant 0 : i32
    %c0_i32_0 = arith.constant 0 : i32
    return %arg0, %c0_i32 : i32, i32
  }
}

module attributes {stable_mosaic.version = 11 : i64} {
  func.func @_apply_recompute_kernel(%arg0: i32, %arg1: memref<512x16xbf16, #tpu.memory_space<vmem>>, %arg2: memref<16x128xbf16, #tpu.memory_space<vmem>>, %arg3: memref<1x128xf32, #tpu.memory_space<vmem>>, %arg4: memref<1x128xf32, #tpu.memory_space<vmem>>, %arg5: memref<512x128xbf16, #tpu.memory_space<vmem>>) attributes {dimension_semantics = [#tpu.dimension_semantics<parallel>], iteration_bounds = array<i64: 1>, scalar_prefetch = 0 : i64, scratch_operands = 0 : i64, tpu.core_type = #tpu.core_type<tc>, window_params = [{transform_indices = @transform_0, window_bounds = array<i64: 512, 16>}, {pipeline_mode = #tpu.pipeline_mode<synchronous>, transform_indices = @transform_1, window_bounds = array<i64: 16, 128>}, {pipeline_mode = #tpu.pipeline_mode<synchronous>, transform_indices = @transform_2, window_bounds = array<i64: 1, 128>}, {pipeline_mode = #tpu.pipeline_mode<synchronous>, transform_indices = @transform_3, window_bounds = array<i64: 1, 128>}, {transform_indices = @transform_4, window_bounds = array<i64: 512, 128>}]} {
    %c0 = arith.constant 0 : index
    %c0_0 = arith.constant 0 : index
    %0 = vector.load %arg1[%c0, %c0_0] : memref<512x16xbf16, #tpu.memory_space<vmem>>, vector<512x16xbf16>
    %c0_1 = arith.constant 0 : index
    %c0_2 = arith.constant 0 : index
    %1 = vector.load %arg2[%c0_1, %c0_2] : memref<16x128xbf16, #tpu.memory_space<vmem>>, vector<16x128xbf16>
    %cst = arith.constant dense<0.000000e+00> : vector<512x128xf32>
    %2 = tpu.matmul %0, %1, %cst {dimension_numbers = #tpu.dot_dimension_numbers<[1], [0], [0], [1], [0, 0, 1, 1], [], []>} : vector<512x16xbf16>, vector<16x128xbf16>, vector<512x128xf32> -> vector<512x128xf32>
    %c0_3 = arith.constant 0 : index
    %c0_4 = arith.constant 0 : index
    %3 = vector.load %arg3[%c0_3, %c0_4] : memref<1x128xf32, #tpu.memory_space<vmem>>, vector<1x128xf32>
    %4 = vector.broadcast %3 : vector<1x128xf32> to vector<512x128xf32>
    %5 = arith.mulf %2, %4 : vector<512x128xf32>
    %c0_5 = arith.constant 0 : index
    %c0_6 = arith.constant 0 : index
    %6 = vector.load %arg4[%c0_5, %c0_6] : memref<1x128xf32, #tpu.memory_space<vmem>>, vector<1x128xf32>
    %7 = vector.broadcast %6 : vector<1x128xf32> to vector<512x128xf32>
    %8 = arith.addf %5, %7 : vector<512x128xf32>
    %cst_7 = arith.constant 0.000000e+00 : f32
    %9 = vector.broadcast %cst_7 : f32 to vector<512x128xf32>
    %10 = arith.cmpf oge, %8, %9 : vector<512x128xf32>
    %cst_8 = arith.constant 2.000000e-01 : f32
    %11 = vector.broadcast %cst_8 : f32 to vector<512x128xf32>
    %12 = arith.mulf %11, %8 : vector<512x128xf32>
    %13 = arith.select %10, %8, %12 : vector<512x128xi1>, vector<512x128xf32>
    %14 = arith.truncf %13 : vector<512x128xf32> to vector<512x128xbf16>
    %c0_9 = arith.constant 0 : index
    %c0_10 = arith.constant 0 : index
    %15 = vector.load %arg5[%c0_9, %c0_10] : memref<512x128xbf16, #tpu.memory_space<vmem>>, vector<512x128xbf16>
    tpu.vector_store %arg5[%c0_9, %c0_10], %14 {strides = array<i32>} : memref<512x128xbf16, #tpu.memory_space<vmem>>, vector<512x128xbf16>,
    return
  }
  func.func @transform_0(%arg0: i32) -> (i32, i32) {
    %c0_i32 = arith.constant 0 : i32
    %c0_i32_0 = arith.constant 0 : i32
    return %arg0, %c0_i32 : i32, i32
  }
  func.func @transform_1(%arg0: i32) -> (i32, i32) {
    %c0_i32 = arith.constant 0 : i32
    %c0_i32_0 = arith.constant 0 : i32
    %c0_i32_1 = arith.constant 0 : i32
    return %c0_i32, %c0_i32_0 : i32, i32
  }
  func.func @transform_2(%arg0: i32) -> (i32, i32) {
    %c0_i32 = arith.constant 0 : i32
    %c0_i32_0 = arith.constant 0 : i32
    %c0_i32_1 = arith.constant 0 : i32
    return %c0_i32, %c0_i32_0 : i32, i32
  }
  func.func @transform_3(%arg0: i32) -> (i32, i32) {
    %c0_i32 = arith.constant 0 : i32
    %c0_i32_0 = arith.constant 0 : i32
    %c0_i32_1 = arith.constant 0 : i32
    return %c0_i32, %c0_i32_0 : i32, i32
  }
  func.func @transform_4(%arg0: i32) -> (i32, i32) {
    %c0_i32 = arith.constant 0 : i32
    %c0_i32_0 = arith.constant 0 : i32
    return %arg0, %c0_i32 : i32, i32
  }
}

</mosaic_0001>

<llo_original>
// kernel: conv_transpose_block.2
$region0: #{conv_transpose_block.2}
  #allocation0 [shape = 'u32[]', space=smem, size = 0x4, offset = 0x4, fixed_abs, tag = 'smem constant byte address 0x4 - core index']
  #allocation1 [shape = 'u32[144,128]{1,0:T(1,128)}', space=vmem, size = 0x12000, scoped, tag = 'internal scratch']
  %s0 = inlined_call_operand.vmem [shape: bf16[512,16], index: 0, kind: input, shape index: {}]
  %s1 = inlined_call_operand.vmem [shape: bf16[16,128], index: 1, kind: input, shape index: {}]
  %s2 = inlined_call_operand.vmem [shape: f32[8,128], index: 2, kind: output, shape index: {0}]
  %s3 = inlined_call_operand.vmem [shape: f32[8,128], index: 3, kind: output, shape index: {1}]
  %4 = xla_tuple %s2, %s3
  %s5 = sld [smem:[#allocation0]]
  $region30: #{conv_transpose_block.2} parent=0
    _
  %s7 = ssub.s32 1, %s5
  %s8 = scalar_select 0, %s7, %s5
  // Predicated region
  $region2: #{conv_transpose_block.2} parent=0 // pred_check
    _
  $region3: #{conv_transpose_block.2} parent=0 // pred_check_branch
    %10 = sbr.rel (0) target = $region5
  $region4: #{conv_transpose_block.2} parent=0 // pred_region
    %s11 = sadd.s32 0, 0
    %s12 = smul.u32 64, %s11
    %p13 = scmp.lt.s32.totalorder %s12, 63
    %s14 = scalar_select %p13, %s12, 63
    %s15 = smul.addr %s14, 4
    %s16 = scalar_lea.vmem %s0, %s15
    %s17 = sadd.s32 0, 0
    %s18 = smul.u32 64, %s17
  $region5: #{conv_transpose_block.2} parent=0 // pred_fallthru
    _
  // Predicated region
  $region6: #{conv_transpose_block.2} parent=0 // pred_check
    _
  $region7: #{conv_transpose_block.2} parent=0 // pred_check_branch
    %20 = sbr.rel (0) target = $region9
  $region8: #{conv_transpose_block.2} parent=0 // pred_region
    _
  $region9: #{conv_transpose_block.2} parent=0 // pred_fallthru
    _
  %s21 = sadd.s32 0, 0
  %s22 = smul.u32 64, %s21
  %p23 = scmp.lt.s32.totalorder %s22, 63
  %s24 = scalar_select %p23, %s22, 63
  %s25 = smul.addr %s24, 4
  %s26 = scalar_lea.vmem %s0, %s25
  %s27 = sadd.s32 0, 0
  %s28 = smul.u32 64, %s27
  %p29 = scmp.lt.s32.totalorder %s28, 63
  %s30 = scalar_select %p29, %s28, 63
  %s31 = smul.addr %s30, 4
  %s32 = scalar_lea.vmem %s0, %s31
  %s33 = sadd.s32 0, 0
  %s34 = smul.u32 64, %s33
  %p36 = scmp.eq.s32.totalorder 0, 0
  // Predicated region
  $region10: #{conv_transpose_block.2} parent=0 // pred_check
    %p37 = pneg %p36
  $region11: #{conv_transpose_block.2} parent=0 // pred_check_branch
    %39 = sbr.rel (%p37) target = $region13
  $region12: #{conv_transpose_block.2} parent=0 // pred_region
    %40 = vst [vmem:[%s2] sm:$0xff] 0.0
    %41 = vst [vmem:[%s3] sm:$0xff] 0.0
  $region13: #{conv_transpose_block.2} parent=0 // pred_fallthru
    _
  %v42 = vld [vmem:[%s32] sm:$0xf]
  %v43 = vld [vmem:[%s32 + $0x4] sm:$0xf]
  %v44 = vld [vmem:[%s32 + $0x8] sm:$0xf]
  %v45 = vld [vmem:[%s32 + $0xc] sm:$0xf]
  %v46 = vld [vmem:[%s32 + $0x10] sm:$0xf]
  %v47 = vld [vmem:[%s32 + $0x14] sm:$0xf]
  %v48 = vld [vmem:[%s32 + $0x18] sm:$0xf]
  %v49 = vld [vmem:[%s32 + $0x1c] sm:$0xf]
  %v50 = vld [vmem:[%s32 + $0x20] sm:$0xf]
  %v51 = vld [vmem:[%s32 + $0x24] sm:$0xf]
  %v52 = vld [vmem:[%s32 + $0x28] sm:$0xf]
  %v53 = vld [vmem:[%s32 + $0x2c] sm:$0xf]
  %v54 = vld [vmem:[%s32 + $0x30] sm:$0xf]
  %v55 = vld [vmem:[%s32 + $0x34] sm:$0xf]
  %v56 = vld [vmem:[%s32 + $0x38] sm:$0xf]
  %v57 = vld [vmem:[%s32 + $0x3c] sm:$0xf]
  %v58 = vld [vmem:[%s32 + $0x40] sm:$0xf]
  %v59 = vld [vmem:[%s32 + $0x44] sm:$0xf]
  %v60 = vld [vmem:[%s32 + $0x48] sm:$0xf]
  %v61 = vld [vmem:[%s32 + $0x4c] sm:$0xf]
  %v62 = vld [vmem:[%s32 + $0x50] sm:$0xf]
  %v63 = vld [vmem:[%s32 + $0x54] sm:$0xf]
  %v64 = vld [vmem:[%s32 + $0x58] sm:$0xf]
  %v65 = vld [vmem:[%s32 + $0x5c] sm:$0xf]
  %v66 = vld [vmem:[%s32 + $0x60] sm:$0xf]
  %v67 = vld [vmem:[%s32 + $0x64] sm:$0xf]
  %v68 = vld [vmem:[%s32 + $0x68] sm:$0xf]
  %v69 = vld [vmem:[%s32 + $0x6c] sm:$0xf]
  %v70 = vld [vmem:[%s32 + $0x70] sm:$0xf]
  %v71 = vld [vmem:[%s32 + $0x74] sm:$0xf]
  %v72 = vld [vmem:[%s32 + $0x78] sm:$0xf]
  %v73 = vld [vmem:[%s32 + $0x7c] sm:$0xf]
  %v74 = vld [vmem:[%s32 + $0x80] sm:$0xf]
  %v75 = vld [vmem:[%s32 + $0x84] sm:$0xf]
  %v76 = vld [vmem:[%s32 + $0x88] sm:$0xf]
  %v77 = vld [vmem:[%s32 + $0x8c] sm:$0xf]
  %v78 = vld [vmem:[%s32 + $0x90] sm:$0xf]
  %v79 = vld [vmem:[%s32 + $0x94] sm:$0xf]
  %v80 = vld [vmem:[%s32 + $0x98] sm:$0xf]
  %v81 = vld [vmem:[%s32 + $0x9c] sm:$0xf]
  %v82 = vld [vmem:[%s32 + $0xa0] sm:$0xf]
  %v83 = vld [vmem:[%s32 + $0xa4] sm:$0xf]
  %v84 = vld [vmem:[%s32 + $0xa8] sm:$0xf]
  %v85 = vld [vmem:[%s32 + $0xac] sm:$0xf]
  %v86 = vld [vmem:[%s32 + $0xb0] sm:$0xf]
  %v87 = vld [vmem:[%s32 + $0xb4] sm:$0xf]
  %v88 = vld [vmem:[%s32 + $0xb8] sm:$0xf]
  %v89 = vld [vmem:[%s32 + $0xbc] sm:$0xf]
  %v90 = vld [vmem:[%s32 + $0xc0] sm:$0xf]
  %v91 = vld [vmem:[%s32 + $0xc4] sm:$0xf]
  %v92 = vld [vmem:[%s32 + $0xc8] sm:$0xf]
  %v93 = vld [vmem:[%s32 + $0xcc] sm:$0xf]
  %v94 = vld [vmem:[%s32 + $0xd0] sm:$0xf]
  %v95 = vld [vmem:[%s32 + $0xd4] sm:$0xf]
  %v96 = vld [vmem:[%s32 + $0xd8] sm:$0xf]
  %v97 = vld [vmem:[%s32 + $0xdc] sm:$0xf]
  %v98 = vld [vmem:[%s32 + $0xe0] sm:$0xf]
  %v99 = vld [vmem:[%s32 + $0xe4] sm:$0xf]
  %v100 = vld [vmem:[%s32 + $0xe8] sm:$0xf]
  %v101 = vld [vmem:[%s32 + $0xec] sm:$0xf]
  %v102 = vld [vmem:[%s32 + $0xf0] sm:$0xf]
  %v103 = vld [vmem:[%s32 + $0xf4] sm:$0xf]
  %v104 = vld [vmem:[%s32 + $0xf8] sm:$0xf]
  %v105 = vld [vmem:[%s32 + $0xfc] sm:$0xf]
  %v106 = vld [vmem:[%s1] sm:$0xf]
  %v107 = vld [vmem:[%s1 + $0x4] sm:$0xf]
  %v172 = vunpack.c.l.b16 %v42
  %v173 = vunpack.c.l.b16 %v43
  %v174 = vunpack.c.l.b16 %v44
  %v175 = vunpack.c.l.b16 %v45
  %v176 = vunpack.c.l.b16 %v46
  %v177 = vunpack.c.l.b16 %v47
  %v178 = vunpack.c.l.b16 %v48
  %v179 = vunpack.c.l.b16 %v49
  %v180 = vunpack.c.l.b16 %v50
  %v181 = vunpack.c.l.b16 %v51
  %v182 = vunpack.c.l.b16 %v52
  %v183 = vunpack.c.l.b16 %v53
  %v184 = vunpack.c.l.b16 %v54
  %v185 = vunpack.c.l.b16 %v55
  %v186 = vunpack.c.l.b16 %v56
  %v187 = vunpack.c.l.b16 %v57
  %v188 = vunpack.c.l.b16 %v58
  %v189 = vunpack.c.l.b16 %v59
  %v190 = vunpack.c.l.b16 %v60
  %v191 = vunpack.c.l.b16 %v61
  %v192 = vunpack.c.l.b16 %v62
  %v193 = vunpack.c.l.b16 %v63
  %v194 = vunpack.c.l.b16 %v64
  %v195 = vunpack.c.l.b16 %v65
  %v196 = vunpack.c.l.b16 %v66
  %v197 = vunpack.c.l.b16 %v67
  %v198 = vunpack.c.l.b16 %v68
  %v199 = vunpack.c.l.b16 %v69
  %v200 = vunpack.c.l.b16 %v70
  %v201 = vunpack.c.l.b16 %v71
  %v202 = vunpack.c.l.b16 %v72
  %v203 = vunpack.c.l.b16 %v73
  %v204 = vunpack.c.l.b16 %v74
  %v205 = vunpack.c.l.b16 %v75
  %v206 = vunpack.c.l.b16 %v76
  %v207 = vunpack.c.l.b16 %v77
  %v208 = vunpack.c.l.b16 %v78
  %v209 = vunpack.c.l.b16 %v79
  %v210 = vunpack.c.l.b16 %v80
  %v211 = vunpack.c.l.b16 %v81
  %v212 = vunpack.c.l.b16 %v82
  %v213 = vunpack.c.l.b16 %v83
  %v214 = vunpack.c.l.b16 %v84
  %v215 = vunpack.c.l.b16 %v85
  %v216 = vunpack.c.l.b16 %v86
  %v217 = vunpack.c.l.b16 %v87
  %v218 = vunpack.c.l.b16 %v88
  %v219 = vunpack.c.l.b16 %v89
  %v220 = vunpack.c.l.b16 %v90
  %v221 = vunpack.c.l.b16 %v91
  %v222 = vunpack.c.l.b16 %v92
  %v223 = vunpack.c.l.b16 %v93
  %v224 = vunpack.c.l.b16 %v94
  %v225 = vunpack.c.l.b16 %v95
  %v226 = vunpack.c.l.b16 %v96
  %v227 = vunpack.c.l.b16 %v97
  %v228 = vunpack.c.l.b16 %v98
  %v229 = vunpack.c.l.b16 %v99
  %v230 = vunpack.c.l.b16 %v100
  %v231 = vunpack.c.l.b16 %v101
  %v232 = vunpack.c.l.b16 %v102
  %v233 = vunpack.c.l.b16 %v103
  %v234 = vunpack.c.l.b16 %v104
  %v235 = vunpack.c.l.b16 %v105
  %v236 = vpack.c.b16 %v173, %v172
  %v237 = vpack.c.b16 %v175, %v174
  %v238 = vpack.c.b16 %v177, %v176
  %v239 = vpack.c.b16 %v179, %v178
  %v240 = vpack.c.b16 %v181, %v180
  %v241 = vpack.c.b16 %v183, %v182
  %v242 = vpack.c.b16 %v185, %v184
  %v243 = vpack.c.b16 %v187, %v186
  %v244 = vpack.c.b16 %v189, %v188
  %v245 = vpack.c.b16 %v191, %v190
  %v246 = vpack.c.b16 %v193, %v192
  %v247 = vpack.c.b16 %v195, %v194
  %v248 = vpack.c.b16 %v197, %v196
  %v249 = vpack.c.b16 %v199, %v198
  %v250 = vpack.c.b16 %v201, %v200
  %v251 = vpack.c.b16 %v203, %v202
  %v252 = vpack.c.b16 %v205, %v204
  %v253 = vpack.c.b16 %v207, %v206
  %v254 = vpack.c.b16 %v209, %v208
  %v255 = vpack.c.b16 %v211, %v210
  %v256 = vpack.c.b16 %v213, %v212
  %v257 = vpack.c.b16 %v215, %v214
  %v258 = vpack.c.b16 %v217, %v216
  %v259 = vpack.c.b16 %v219, %v218
  %v260 = vpack.c.b16 %v221, %v220
  %v261 = vpack.c.b16 %v223, %v222
  %v262 = vpack.c.b16 %v225, %v224
  %v263 = vpack.c.b16 %v227, %v226
  %v264 = vpack.c.b16 %v229, %v228
  %v265 = vpack.c.b16 %v231, %v230
  %v266 = vpack.c.b16 %v233, %v232
  %v267 = vpack.c.b16 %v235, %v234
  %v270 = vunpack.c.l.b16 %v106
  %v271 = vunpack.c.l.b16 %v107
  %v272 = vpack.c.b16 %v271, %v270
  %vm274 = vcmask 130048
  %v276 = vsel %vm274, %v236, 0
  %v279 = vsel %vm274, %v237, 0
  %v282 = vsel %vm274, %v238, 0
  %v285 = vsel %vm274, %v239, 0
  %v288 = vsel %vm274, %v240, 0
  %v291 = vsel %vm274, %v241, 0
  %v294 = vsel %vm274, %v242, 0
  %v297 = vsel %vm274, %v243, 0
  %v300 = vsel %vm274, %v244, 0
  %v303 = vsel %vm274, %v245, 0
  %v306 = vsel %vm274, %v246, 0
  %v309 = vsel %vm274, %v247, 0
  %v312 = vsel %vm274, %v248, 0
  %v315 = vsel %vm274, %v249, 0
  %v318 = vsel %vm274, %v250, 0
  %v321 = vsel %vm274, %v251, 0
  %v324 = vsel %vm274, %v252, 0
  %v327 = vsel %vm274, %v253, 0
  %v330 = vsel %vm274, %v254, 0
  %v333 = vsel %vm274, %v255, 0
  %v336 = vsel %vm274, %v256, 0
  %v339 = vsel %vm274, %v257, 0
  %v342 = vsel %vm274, %v258, 0
  %v345 = vsel %vm274, %v259, 0
  %v348 = vsel %vm274, %v260, 0
  %v351 = vsel %vm274, %v261, 0
  %v354 = vsel %vm274, %v262, 0
  %v357 = vsel %vm274, %v263, 0
  %v360 = vsel %vm274, %v264, 0
  %v363 = vsel %vm274, %v265, 0
  %v366 = vsel %vm274, %v266, 0
  %v369 = vsel %vm274, %v267, 0
  %371 = vmatprep.subr.bf16.mxu0 0
  %372 = vmatpush1.bf16.msra.mxu0 %v272
  %373 = vmatprep.subr.bf16.mxu0 0
  %374 = vmatpush1.bf16.msra.mxu0 0
  %375 = vmatprep.subr.bf16.mxu0 0
  %376 = vmatpush1.bf16.msra.mxu0 0
  %377 = vmatprep.subr.bf16.mxu0 0
  %378 = vmatpush1.bf16.msra.mxu0 0
  %379 = vmatprep.subr.bf16.mxu0 0
  %380 = vmatpush1.bf16.msra.mxu0 0
  %381 = vmatprep.subr.bf16.mxu0 0
  %382 = vmatpush1.bf16.msra.mxu0 0
  %383 = vmatprep.subr.bf16.mxu0 0
  %384 = vmatpush1.bf16.msra.mxu0 0
  %385 = vmatprep.subr.bf16.mxu0 0
  %386 = vmatpush1.bf16.msra.mxu0 0
  %387 = vmatprep.subr.bf16.mxu0 0
  %388 = vmatpush1.bf16.msra.mxu0 0
  %389 = vmatprep.subr.bf16.mxu0 0
  %390 = vmatpush1.bf16.msra.mxu0 0
  %391 = vmatprep.subr.bf16.mxu0 0
  %392 = vmatpush1.bf16.msra.mxu0 0
  %393 = vmatprep.subr.bf16.mxu0 0
  %394 = vmatpush1.bf16.msra.mxu0 0
  %395 = vmatprep.subr.bf16.mxu0 0
  %396 = vmatpush1.bf16.msra.mxu0 0
  %397 = vmatprep.subr.bf16.mxu0 0
  %398 = vmatpush1.bf16.msra.mxu0 0
  %399 = vmatprep.subr.bf16.mxu0 0
  %400 = vmatpush1.bf16.msra.mxu0 0
  %401 = vmatprep.subr.bf16.mxu0 0
  %402 = vmatpush1.bf16.msra.mxu0 0
  %403 = vmatprep.mubr.bf16.mxu0 0
  %404 = vmatmul.mubr.bf16.gmra.mrb[0].mxu0 %v276
  %v405 = vpop.f32.mrb[0].mxu0
  %v406 = vadd.f32 0.0, %v405
  %v407 = vpop.f32.mrb[0].mxu0
  %v408 = vpop.f32.mrb[0].mxu0
  %v409 = vadd.f32 0.0, %v408
  %v410 = vpop.f32.mrb[0].mxu0
  %411 = vmatprep.mubr.bf16.mxu0 0
  %412 = vmatmul.mubr.bf16.gmra.mrb[0].mxu0 %v279
  %v413 = vpop.f32.mrb[0].mxu0
  %v414 = vadd.f32 0.0, %v413
  %v415 = vpop.f32.mrb[0].mxu0
  %v416 = vpop.f32.mrb[0].mxu0
  %v417 = vadd.f32 0.0, %v416
  %v418 = vpop.f32.mrb[0].mxu0
  %419 = vmatprep.mubr.bf16.mxu0 0
  %420 = vmatmul.mubr.bf16.gmra.mrb[0].mxu0 %v282
  %v421 = vpop.f32.mrb[0].mxu0
  %v422 = vadd.f32 0.0, %v421
  %v423 = vpop.f32.mrb[0].mxu0
  %v424 = vpop.f32.mrb[0].mxu0
  %v425 = vadd.f32 0.0, %v424
  %v426 = vpop.f32.mrb[0].mxu0
  %427 = vmatprep.mubr.bf16.mxu0 0
  %428 = vmatmul.mubr.bf16.gmra.mrb[0].mxu0 %v285
  %v429 = vpop.f32.mrb[0].mxu0
  %v430 = vadd.f32 0.0, %v429
  %v431 = vpop.f32.mrb[0].mxu0
  %v432 = vpop.f32.mrb[0].mxu0
  %v433 = vadd.f32 0.0, %v432
  %v434 = vpop.f32.mrb[0].mxu0
  %435 = vmatprep.mubr.bf16.mxu0 0
  %436 = vmatmul.mubr.bf16.gmra.mrb[0].mxu0 %v288
  %v437 = vpop.f32.mrb[0].mxu0
  %v438 = vadd.f32 0.0, %v437
  %v439 = vpop.f32.mrb[0].mxu0
  %v440 = vpop.f32.mrb[0].mxu0
  %v441 = vadd.f32 0.0, %v440
  %v442 = vpop.f32.mrb[0].mxu0
  %443 = vmatprep.mubr.bf16.mxu0 0
  %444 = vmatmul.mubr.bf16.gmra.mrb[0].mxu0 %v291
  %v445 = vpop.f32.mrb[0].mxu0
  %v446 = vadd.f32 0.0, %v445
  %v447 = vpop.f32.mrb[0].mxu0
  %v448 = vpop.f32.mrb[0].mxu0
  %v449 = vadd.f32 0.0, %v448
  %v450 = vpop.f32.mrb[0].mxu0
  %451 = vmatprep.mubr.bf16.mxu0 0
  %452 = vmatmul.mubr.bf16.gmra.mrb[0].mxu0 %v294
  %v453 = vpop.f32.mrb[0].mxu0
  %v454 = vadd.f32 0.0, %v453
  %v455 = vpop.f32.mrb[0].mxu0
  %v456 = vpop.f32.mrb[0].mxu0
  %v457 = vadd.f32 0.0, %v456
  %v458 = vpop.f32.mrb[0].mxu0
  %459 = vmatprep.mubr.bf16.mxu0 0
  %460 = vmatmul.mubr.bf16.gmra.mrb[0].mxu0 %v297
  %v461 = vpop.f32.mrb[0].mxu0
  %v462 = vadd.f32 0.0, %v461
  %v463 = vpop.f32.mrb[0].mxu0
  %v464 = vpop.f32.mrb[0].mxu0
  %v465 = vadd.f32 0.0, %v464
  %v466 = vpop.f32.mrb[0].mxu0
  %467 = vmatprep.mubr.bf16.mxu0 0
  %468 = vmatmul.mubr.bf16.gmra.mrb[0].mxu0 %v300
  %v469 = vpop.f32.mrb[0].mxu0
  %v470 = vadd.f32 0.0, %v469
  %v471 = vpop.f32.mrb[0].mxu0
  %v472 = vpop.f32.mrb[0].mxu0
  %v473 = vadd.f32 0.0, %v472
  %v474 = vpop.f32.mrb[0].mxu0
  %475 = vmatprep.mubr.bf16.mxu0 0
  %476 = vmatmul.mubr.bf16.gmra.mrb[0].mxu0 %v303
  %v477 = vpop.f32.mrb[0].mxu0
  %v478 = vadd.f32 0.0, %v477
  %v479 = vpop.f32.mrb[0].mxu0
  %v480 = vpop.f32.mrb[0].mxu0
  %v481 = vadd.f32 0.0, %v480
  %v482 = vpop.f32.mrb[0].mxu0
  %483 = vmatprep.mubr.bf16.mxu0 0
  %484 = vmatmul.mubr.bf16.gmra.mrb[0].mxu0 %v306
  %v485 = vpop.f32.mrb[0].mxu0
  %v486 = vadd.f32 0.0, %v485
  %v487 = vpop.f32.mrb[0].mxu0
  %v488 = vpop.f32.mrb[0].mxu0
  %v489 = vadd.f32 0.0, %v488
  %v490 = vpop.f32.mrb[0].mxu0
  %491 = vmatprep.mubr.bf16.mxu0 0
  %492 = vmatmul.mubr.bf16.gmra.mrb[0].mxu0 %v309
  %v493 = vpop.f32.mrb[0].mxu0
  %v494 = vadd.f32 0.0, %v493
  %v495 = vpop.f32.mrb[0].mxu0
  %v496 = vpop.f32.mrb[0].mxu0
  %v497 = vadd.f32 0.0, %v496
  %v498 = vpop.f32.mrb[0].mxu0
  %499 = vmatprep.mubr.bf16.mxu0 0
  %500 = vmatmul.mubr.bf16.gmra.mrb[0].mxu0 %v312
  %v501 = vpop.f32.mrb[0].mxu0
  %v502 = vadd.f32 0.0, %v501
  %v503 = vpop.f32.mrb[0].mxu0
  %v504 = vpop.f32.mrb[0].mxu0
  %v505 = vadd.f32 0.0, %v504
  %v506 = vpop.f32.mrb[0].mxu0
  %507 = vmatprep.mubr.bf16.mxu0 0
  %508 = vmatmul.mubr.bf16.gmra.mrb[0].mxu0 %v315
  %v509 = vpop.f32.mrb[0].mxu0
  %v510 = vadd.f32 0.0, %v509
  %v511 = vpop.f32.mrb[0].mxu0
  %v512 = vpop.f32.mrb[0].mxu0
  %v513 = vadd.f32 0.0, %v512
  %v514 = vpop.f32.mrb[0].mxu0
  %515 = vmatprep.mubr.bf16.mxu0 0
  %516 = vmatmul.mubr.bf16.gmra.mrb[0].mxu0 %v318
  %v517 = vpop.f32.mrb[0].mxu0
  %v518 = vadd.f32 0.0, %v517
  %v519 = vpop.f32.mrb[0].mxu0
  %v520 = vpop.f32.mrb[0].mxu0
  %v521 = vadd.f32 0.0, %v520
  %v522 = vpop.f32.mrb[0].mxu0
  %523 = vmatprep.mubr.bf16.mxu0 0
  %524 = vmatmul.mubr.bf16.gmra.mrb[0].mxu0 %v321
  %v525 = vpop.f32.mrb[0].mxu0
  %v526 = vadd.f32 0.0, %v525
  %v527 = vpop.f32.mrb[0].mxu0
  %v528 = vpop.f32.mrb[0].mxu0
  %v529 = vadd.f32 0.0, %v528
  %v530 = vpop.f32.mrb[0].mxu0
  %531 = vmatprep.mubr.bf16.mxu0 0
  %532 = vmatmul.mubr.bf16.gmra.mrb[0].mxu0 %v324
  %v533 = vpop.f32.mrb[0].mxu0
  %v534 = vadd.f32 0.0, %v533
  %v535 = vpop.f32.mrb[0].mxu0
  %v536 = vpop.f32.mrb[0].mxu0
  %v537 = vadd.f32 0.0, %v536
  %v538 = vpop.f32.mrb[0].mxu0
  %539 = vmatprep.mubr.bf16.mxu0 0
  %540 = vmatmul.mubr.bf16.gmra.mrb[0].mxu0 %v327
  %v541 = vpop.f32.mrb[0].mxu0
  %v542 = vadd.f32 0.0, %v541
  %v543 = vpop.f32.mrb[0].mxu0
  %v544 = vpop.f32.mrb[0].mxu0
  %v545 = vadd.f32 0.0, %v544
  %v546 = vpop.f32.mrb[0].mxu0
  %547 = vmatprep.mubr.bf16.mxu0 0
  %548 = vmatmul.mubr.bf16.gmra.mrb[0].mxu0 %v330
  %v549 = vpop.f32.mrb[0].mxu0
  %v550 = vadd.f32 0.0, %v549
  %v551 = vpop.f32.mrb[0].mxu0
  %v552 = vpop.f32.mrb[0].mxu0
  %v553 = vadd.f32 0.0, %v552
  %v554 = vpop.f32.mrb[0].mxu0
  %555 = vmatprep.mubr.bf16.mxu0 0
  %556 = vmatmul.mubr.bf16.gmra.mrb[0].mxu0 %v333
  %v557 = vpop.f32.mrb[0].mxu0
  %v558 = vadd.f32 0.0, %v557
  %v559 = vpop.f32.mrb[0].mxu0
  %v560 = vpop.f32.mrb[0].mxu0
  %v561 = vadd.f32 0.0, %v560
  %v562 = vpop.f32.mrb[0].mxu0
  %563 = vmatprep.mubr.bf16.mxu0 0
  %564 = vmatmul.mubr.bf16.gmra.mrb[0].mxu0 %v336
  %v565 = vpop.f32.mrb[0].mxu0
  %v566 = vadd.f32 0.0, %v565
  %v567 = vpop.f32.mrb[0].mxu0
  %v568 = vpop.f32.mrb[0].mxu0
  %v569 = vadd.f32 0.0, %v568
  %v570 = vpop.f32.mrb[0].mxu0
  %571 = vmatprep.mubr.bf16.mxu0 0
  %572 = vmatmul.mubr.bf16.gmra.mrb[0].mxu0 %v339
  %v573 = vpop.f32.mrb[0].mxu0
  %v574 = vadd.f32 0.0, %v573
  %v575 = vpop.f32.mrb[0].mxu0
  %v576 = vpop.f32.mrb[0].mxu0
  %v577 = vadd.f32 0.0, %v576
  %v578 = vpop.f32.mrb[0].mxu0
  %579 = vmatprep.mubr.bf16.mxu0 0
  %580 = vmatmul.mubr.bf16.gmra.mrb[0].mxu0 %v342
  %v581 = vpop.f32.mrb[0].mxu0
  %v582 = vadd.f32 0.0, %v581
  %v583 = vpop.f32.mrb[0].mxu0
  %v584 = vpop.f32.mrb[0].mxu0
  %v585 = vadd.f32 0.0, %v584
  %v586 = vpop.f32.mrb[0].mxu0
  %587 = vmatprep.mubr.bf16.mxu0 0
  %588 = vmatmul.mubr.bf16.gmra.mrb[0].mxu0 %v345
  %v589 = vpop.f32.mrb[0].mxu0
  %v590 = vadd.f32 0.0, %v589
  %v591 = vpop.f32.mrb[0].mxu0
  %v592 = vpop.f32.mrb[0].mxu0
  %v593 = vadd.f32 0.0, %v592
  %v594 = vpop.f32.mrb[0].mxu0
  %595 = vmatprep.mubr.bf16.mxu0 0
  %596 = vmatmul.mubr.bf16.gmra.mrb[0].mxu0 %v348
  %v597 = vpop.f32.mrb[0].mxu0
  %v598 = vadd.f32 0.0, %v597
  %v599 = vpop.f32.mrb[0].mxu0
  %v600 = vpop.f32.mrb[0].mxu0
  %v601 = vadd.f32 0.0, %v600
  %v602 = vpop.f32.mrb[0].mxu0
  %603 = vmatprep.mubr.bf16.mxu0 0
  %604 = vmatmul.mubr.bf16.gmra.mrb[0].mxu0 %v351
  %v605 = vpop.f32.mrb[0].mxu0
  %v606 = vadd.f32 0.0, %v605
  %v607 = vpop.f32.mrb[0].mxu0
  %v608 = vpop.f32.mrb[0].mxu0
  %v609 = vadd.f32 0.0, %v608
  %v610 = vpop.f32.mrb[0].mxu0
  %611 = vmatprep.mubr.bf16.mxu0 0
  %612 = vmatmul.mubr.bf16.gmra.mrb[0].mxu0 %v354
  %v613 = vpop.f32.mrb[0].mxu0
  %v614 = vadd.f32 0.0, %v613
  %v615 = vpop.f32.mrb[0].mxu0
  %v616 = vpop.f32.mrb[0].mxu0
  %v617 = vadd.f32 0.0, %v616
  %v618 = vpop.f32.mrb[0].mxu0
  %619 = vmatprep.mubr.bf16.mxu0 0
  %620 = vmatmul.mubr.bf16.gmra.mrb[0].mxu0 %v357
  %v621 = vpop.f32.mrb[0].mxu0
  %v622 = vadd.f32 0.0, %v621
  %v623 = vpop.f32.mrb[0].mxu0
  %v624 = vpop.f32.mrb[0].mxu0
  %v625 = vadd.f32 0.0, %v624
  %v626 = vpop.f32.mrb[0].mxu0
  %627 = vmatprep.mubr.bf16.mxu0 0
  %628 = vmatmul.mubr.bf16.gmra.mrb[0].mxu0 %v360
  %v629 = vpop.f32.mrb[0].mxu0
  %v630 = vadd.f32 0.0, %v629
  %v631 = vpop.f32.mrb[0].mxu0
  %v632 = vpop.f32.mrb[0].mxu0
  %v633 = vadd.f32 0.0, %v632
  %v634 = vpop.f32.mrb[0].mxu0
  %635 = vmatprep.mubr.bf16.mxu0 0
  %636 = vmatmul.mubr.bf16.gmra.mrb[0].mxu0 %v363
  %v637 = vpop.f32.mrb[0].mxu0
  %v638 = vadd.f32 0.0, %v637
  %v639 = vpop.f32.mrb[0].mxu0
  %v640 = vpop.f32.mrb[0].mxu0
  %v641 = vadd.f32 0.0, %v640
  %v642 = vpop.f32.mrb[0].mxu0
  %643 = vmatprep.mubr.bf16.mxu0 0
  %644 = vmatmul.mubr.bf16.gmra.mrb[0].mxu0 %v366
  %v645 = vpop.f32.mrb[0].mxu0
  %v646 = vadd.f32 0.0, %v645
  %v647 = vpop.f32.mrb[0].mxu0
  %v648 = vpop.f32.mrb[0].mxu0
  %v649 = vadd.f32 0.0, %v648
  %v650 = vpop.f32.mrb[0].mxu0
  %651 = vmatprep.mubr.bf16.mxu0 0
  %652 = vmatmul.mubr.bf16.gmra.mrb[0].mxu0 %v369
  %v653 = vpop.f32.mrb[0].mxu0
  %v654 = vadd.f32 0.0, %v653
  %v655 = vpop.f32.mrb[0].mxu0
  %v656 = vpop.f32.mrb[0].mxu0
  %v657 = vadd.f32 0.0, %v656
  %v658 = vpop.f32.mrb[0].mxu0
  %659 = vdwg.mxu0
  %v660 = vld [vmem:[%s2] sm:$0xff]
  %v661 = vadd.f32 %v406, %v409
  %v662 = vadd.f32 %v661, %v414
  %v663 = vadd.f32 %v662, %v417
  %v664 = vadd.f32 %v663, %v422
  %v665 = vadd.f32 %v664, %v425
  %v666 = vadd.f32 %v665, %v430
  %v667 = vadd.f32 %v666, %v433
  %v668 = vadd.f32 %v667, %v438
  %v669 = vadd.f32 %v668, %v441
  %v670 = vadd.f32 %v669, %v446
  %v671 = vadd.f32 %v670, %v449
  %v672 = vadd.f32 %v671, %v454
  %v673 = vadd.f32 %v672, %v457
  %v674 = vadd.f32 %v673, %v462
  %v675 = vadd.f32 %v674, %v465
  %v676 = vadd.f32 %v675, %v470
  %v677 = vadd.f32 %v676, %v473
  %v678 = vadd.f32 %v677, %v478
  %v679 = vadd.f32 %v678, %v481
  %v680 = vadd.f32 %v679, %v486
  %v681 = vadd.f32 %v680, %v489
  %v682 = vadd.f32 %v681, %v494
  %v683 = vadd.f32 %v682, %v497
  %v684 = vadd.f32 %v683, %v502
  %v685 = vadd.f32 %v684, %v505
  %v686 = vadd.f32 %v685, %v510
  %v687 = vadd.f32 %v686, %v513
  %v688 = vadd.f32 %v687, %v518
  %v689 = vadd.f32 %v688, %v521
  %v690 = vadd.f32 %v689, %v526
  %v691 = vadd.f32 %v690, %v529
  %v692 = vadd.f32 %v691, %v534
  %v693 = vadd.f32 %v692, %v537
  %v694 = vadd.f32 %v693, %v542
  %v695 = vadd.f32 %v694, %v545
  %v696 = vadd.f32 %v695, %v550
  %v697 = vadd.f32 %v696, %v553
  %v698 = vadd.f32 %v697, %v558
  %v699 = vadd.f32 %v698, %v561
  %v700 = vadd.f32 %v699, %v566
  %v701 = vadd.f32 %v700, %v569
  %v702 = vadd.f32 %v701, %v574
  %v703 = vadd.f32 %v702, %v577
  %v704 = vadd.f32 %v703, %v582
  %v705 = vadd.f32 %v704, %v585
  %v706 = vadd.f32 %v705, %v590
  %v707 = vadd.f32 %v706, %v593
  %v708 = vadd.f32 %v707, %v598
  %v709 = vadd.f32 %v708, %v601
  %v710 = vadd.f32 %v709, %v606
  %v711 = vadd.f32 %v710, %v609
  %v712 = vadd.f32 %v711, %v614
  %v713 = vadd.f32 %v712, %v617
  %v714 = vadd.f32 %v713, %v622
  %v715 = vadd.f32 %v714, %v625
  %v716 = vadd.f32 %v715, %v630
  %v717 = vadd.f32 %v716, %v633
  %v718 = vadd.f32 %v717, %v638
  %v719 = vadd.f32 %v718, %v641
  %v720 = vadd.f32 %v719, %v646
  %v721 = vadd.f32 %v720, %v649
  %v722 = vadd.f32 %v721, %v654
  %v723 = vadd.f32 %v722, %v657
  %v724 = vadd.f32 %v660, %v723
  %725 = vst [vmem:[%s2] sm:$0xff] %v724
  %v726 = vld [vmem:[%s3] sm:$0xff]
  %v727 = vmul.f32 %v406, %v406
  %v728 = vmul.f32 %v409, %v409
  %v729 = vmul.f32 %v414, %v414
  %v730 = vmul.f32 %v417, %v417
  %v731 = vmul.f32 %v422, %v422
  %v732 = vmul.f32 %v425, %v425
  %v733 = vmul.f32 %v430, %v430
  %v734 = vmul.f32 %v433, %v433
  %v735 = vmul.f32 %v438, %v438
  %v736 = vmul.f32 %v441, %v441
  %v737 = vmul.f32 %v446, %v446
  %v738 = vmul.f32 %v449, %v449
  %v739 = vmul.f32 %v454, %v454
  %v740 = vmul.f32 %v457, %v457
  %v741 = vmul.f32 %v462, %v462
  %v742 = vmul.f32 %v465, %v465
  %v743 = vmul.f32 %v470, %v470
  %v744 = vmul.f32 %v473, %v473
  %v745 = vmul.f32 %v478, %v478
  %v746 = vmul.f32 %v481, %v481
  %v747 = vmul.f32 %v486, %v486
  %v748 = vmul.f32 %v489, %v489
  %v749 = vmul.f32 %v494, %v494
  %v750 = vmul.f32 %v497, %v497
  %v751 = vmul.f32 %v502, %v502
  %v752 = vmul.f32 %v505, %v505
  %v753 = vmul.f32 %v510, %v510
  %v754 = vmul.f32 %v513, %v513
  %v755 = vmul.f32 %v518, %v518
  %v756 = vmul.f32 %v521, %v521
  %v757 = vmul.f32 %v526, %v526
  %v758 = vmul.f32 %v529, %v529
  %v759 = vmul.f32 %v534, %v534
  %v760 = vmul.f32 %v537, %v537
  %v761 = vmul.f32 %v542, %v542
  %v762 = vmul.f32 %v545, %v545
  %v763 = vmul.f32 %v550, %v550
  %v764 = vmul.f32 %v553, %v553
  %v765 = vmul.f32 %v558, %v558
  %v766 = vmul.f32 %v561, %v561
  %v767 = vmul.f32 %v566, %v566
  %v768 = vmul.f32 %v569, %v569
  %v769 = vmul.f32 %v574, %v574
  %v770 = vmul.f32 %v577, %v577
  %v771 = vmul.f32 %v582, %v582
  %v772 = vmul.f32 %v585, %v585
  %v773 = vmul.f32 %v590, %v590
  %v774 = vmul.f32 %v593, %v593
  %v775 = vmul.f32 %v598, %v598
  %v776 = vmul.f32 %v601, %v601
  %v777 = vmul.f32 %v606, %v606
  %v778 = vmul.f32 %v609, %v609
  %v779 = vmul.f32 %v614, %v614
  %v780 = vmul.f32 %v617, %v617
  %v781 = vmul.f32 %v622, %v622
  %v782 = vmul.f32 %v625, %v625
  %v783 = vmul.f32 %v630, %v630
  %v784 = vmul.f32 %v633, %v633
  %v785 = vmul.f32 %v638, %v638
  %v786 = vmul.f32 %v641, %v641
  %v787 = vmul.f32 %v646, %v646
  %v788 = vmul.f32 %v649, %v649
  %v789 = vmul.f32 %v654, %v654
  %v790 = vmul.f32 %v657, %v657
  %v791 = vadd.f32 %v727, %v728
  %v792 = vadd.f32 %v791, %v729
  %v793 = vadd.f32 %v792, %v730
  %v794 = vadd.f32 %v793, %v731
  %v795 = vadd.f32 %v794, %v732
  %v796 = vadd.f32 %v795, %v733
  %v797 = vadd.f32 %v796, %v734
  %v798 = vadd.f32 %v797, %v735
  %v799 = vadd.f32 %v798, %v736
  %v800 = vadd.f32 %v799, %v737
  %v801 = vadd.f32 %v800, %v738
  %v802 = vadd.f32 %v801, %v739
  %v803 = vadd.f32 %v802, %v740
  %v804 = vadd.f32 %v803, %v741
  %v805 = vadd.f32 %v804, %v742
  %v806 = vadd.f32 %v805, %v743
  %v807 = vadd.f32 %v806, %v744
  %v808 = vadd.f32 %v807, %v745
  %v809 = vadd.f32 %v808, %v746
  %v810 = vadd.f32 %v809, %v747
  %v811 = vadd.f32 %v810, %v748
  %v812 = vadd.f32 %v811, %v749
  %v813 = vadd.f32 %v812, %v750
  %v814 = vadd.f32 %v813, %v751
  %v815 = vadd.f32 %v814, %v752
  %v816 = vadd.f32 %v815, %v753
  %v817 = vadd.f32 %v816, %v754
  %v818 = vadd.f32 %v817, %v755
  %v819 = vadd.f32 %v818, %v756
  %v820 = vadd.f32 %v819, %v757
  %v821 = vadd.f32 %v820, %v758
  %v822 = vadd.f32 %v821, %v759
  %v823 = vadd.f32 %v822, %v760
  %v824 = vadd.f32 %v823, %v761
  %v825 = vadd.f32 %v824, %v762
  %v826 = vadd.f32 %v825, %v763
  %v827 = vadd.f32 %v826, %v764
  %v828 = vadd.f32 %v827, %v765
  %v829 = vadd.f32 %v828, %v766
  %v830 = vadd.f32 %v829, %v767
  %v831 = vadd.f32 %v830, %v768
  %v832 = vadd.f32 %v831, %v769
  %v833 = vadd.f32 %v832, %v770
  %v834 = vadd.f32 %v833, %v771
  %v835 = vadd.f32 %v834, %v772
  %v836 = vadd.f32 %v835, %v773
  %v837 = vadd.f32 %v836, %v774
  %v838 = vadd.f32 %v837, %v775
  %v839 = vadd.f32 %v838, %v776
  %v840 = vadd.f32 %v839, %v777
  %v841 = vadd.f32 %v840, %v778
  %v842 = vadd.f32 %v841, %v779
  %v843 = vadd.f32 %v842, %v780
  %v844 = vadd.f32 %v843, %v781
  %v845 = vadd.f32 %v844, %v782
  %v846 = vadd.f32 %v845, %v783
  %v847 = vadd.f32 %v846, %v784
  %v848 = vadd.f32 %v847, %v785
  %v849 = vadd.f32 %v848, %v786
  %v850 = vadd.f32 %v849, %v787
  %v851 = vadd.f32 %v850, %v788
  %v852 = vadd.f32 %v851, %v789
  %v853 = vadd.f32 %v852, %v790
  %v854 = vadd.f32 %v726, %v853
  %855 = vst [vmem:[%s3] sm:$0xff] %v854
  // Predicated region
  $region14: #{conv_transpose_block.2} parent=0 // pred_check
    _
  $region15: #{conv_transpose_block.2} parent=0 // pred_check_branch
    %857 = sbr.rel (0) target = $region17
  $region16: #{conv_transpose_block.2} parent=0 // pred_region
    _
  $region17: #{conv_transpose_block.2} parent=0 // pred_fallthru
    _
  // Predicated region
  $region18: #{conv_transpose_block.2} parent=0 // pred_check
    _
  $region19: #{conv_transpose_block.2} parent=0 // pred_check_branch
    %859 = sbr.rel (0) target = $region21
  $region20: #{conv_transpose_block.2} parent=0 // pred_region
    _
  $region21: #{conv_transpose_block.2} parent=0 // pred_fallthru
    _
  // Predicated region
  $region22: #{conv_transpose_block.2} parent=0 // pred_check
    _
  $region23: #{conv_transpose_block.2} parent=0 // pred_check_branch
    %861 = sbr.rel (0) target = $region25
  $region24: #{conv_transpose_block.2} parent=0 // pred_region
    _
  $region25: #{conv_transpose_block.2} parent=0 // pred_fallthru
    _
  // Predicated region
  $region26: #{conv_transpose_block.2} parent=0 // pred_check
    _
  $region27: #{conv_transpose_block.2} parent=0 // pred_check_branch
    %863 = sbr.rel (0) target = $region29
  $region28: #{conv_transpose_block.2} parent=0 // pred_region
    _
  $region29: #{conv_transpose_block.2} parent=0 // pred_fallthru
    _

// kernel: conv_transpose_block.3
$region0: #{conv_transpose_block.3}
  #allocation0 [shape = 'u32[]', space=smem, size = 0x4, offset = 0x4, fixed_abs, tag = 'smem constant byte address 0x4 - core index']
  #allocation1 [shape = 'u32[144,128]{1,0:T(1,128)}', space=vmem, size = 0x12000, scoped, tag = 'internal scratch']
  %s0 = inlined_call_operand.vmem [shape: bf16[512,16], index: 0, kind: input, shape index: {}]
  %s1 = inlined_call_operand.vmem [shape: bf16[16,128], index: 1, kind: input, shape index: {}]
  %s2 = inlined_call_operand.vmem [shape: f32[1,128], index: 2, kind: input, shape index: {}]
  %s3 = inlined_call_operand.vmem [shape: f32[1,128], index: 3, kind: input, shape index: {}]
  %s4 = inlined_call_operand.vmem [shape: bf16[512,128], index: 4, kind: output, shape index: {}]
  %s5 = sld [smem:[#allocation0]]
  $region26: #{conv_transpose_block.3} parent=0
    _
  %s7 = ssub.s32 1, %s5
  %s8 = scalar_select 0, %s7, %s5
  // Predicated region
  $region2: #{conv_transpose_block.3} parent=0 // pred_check
    _
  $region3: #{conv_transpose_block.3} parent=0 // pred_check_branch
    %10 = sbr.rel (0) target = $region5
  $region4: #{conv_transpose_block.3} parent=0 // pred_region
    _
  $region5: #{conv_transpose_block.3} parent=0 // pred_fallthru
    _
  // Predicated region
  $region6: #{conv_transpose_block.3} parent=0 // pred_check
    _
  $region7: #{conv_transpose_block.3} parent=0 // pred_check_branch
    %12 = sbr.rel (0) target = $region9
  $region8: #{conv_transpose_block.3} parent=0 // pred_region
    _
  $region9: #{conv_transpose_block.3} parent=0 // pred_fallthru
    _
  // Predicated region
  $region10: #{conv_transpose_block.3} parent=0 // pred_check
    _
  $region11: #{conv_transpose_block.3} parent=0 // pred_check_branch
    %14 = sbr.rel (0) target = $region13
  $region12: #{conv_transpose_block.3} parent=0 // pred_region
    _
  $region13: #{conv_transpose_block.3} parent=0 // pred_fallthru
    _
  // Predicated region
  $region14: #{conv_transpose_block.3} parent=0 // pred_check
    _
  $region15: #{conv_transpose_block.3} parent=0 // pred_check_branch
    %16 = sbr.rel (0) target = $region17
  $region16: #{conv_transpose_block.3} parent=0 // pred_region
    _
  $region17: #{conv_transpose_block.3} parent=0 // pred_fallthru
    _
  %v18 = vld [vmem:[%s0] sm:$0xf]
  %v19 = vld [vmem:[%s0 + $0x4] sm:$0xf]
  %v20 = vld [vmem:[%s0 + $0x8] sm:$0xf]
  %v21 = vld [vmem:[%s0 + $0xc] sm:$0xf]
  %v22 = vld [vmem:[%s0 + $0x10] sm:$0xf]
  %v23 = vld [vmem:[%s0 + $0x14] sm:$0xf]
  %v24 = vld [vmem:[%s0 + $0x18] sm:$0xf]
  %v25 = vld [vmem:[%s0 + $0x1c] sm:$0xf]
  %v26 = vld [vmem:[%s0 + $0x20] sm:$0xf]
  %v27 = vld [vmem:[%s0 + $0x24] sm:$0xf]
  %v28 = vld [vmem:[%s0 + $0x28] sm:$0xf]
  %v29 = vld [vmem:[%s0 + $0x2c] sm:$0xf]
  %v30 = vld [vmem:[%s0 + $0x30] sm:$0xf]
  %v31 = vld [vmem:[%s0 + $0x34] sm:$0xf]
  %v32 = vld [vmem:[%s0 + $0x38] sm:$0xf]
  %v33 = vld [vmem:[%s0 + $0x3c] sm:$0xf]
  %v34 = vld [vmem:[%s0 + $0x40] sm:$0xf]
  %v35 = vld [vmem:[%s0 + $0x44] sm:$0xf]
  %v36 = vld [vmem:[%s0 + $0x48] sm:$0xf]
  %v37 = vld [vmem:[%s0 + $0x4c] sm:$0xf]
  %v38 = vld [vmem:[%s0 + $0x50] sm:$0xf]
  %v39 = vld [vmem:[%s0 + $0x54] sm:$0xf]
  %v40 = vld [vmem:[%s0 + $0x58] sm:$0xf]
  %v41 = vld [vmem:[%s0 + $0x5c] sm:$0xf]
  %v42 = vld [vmem:[%s0 + $0x60] sm:$0xf]
  %v43 = vld [vmem:[%s0 + $0x64] sm:$0xf]
  %v44 = vld [vmem:[%s0 + $0x68] sm:$0xf]
  %v45 = vld [vmem:[%s0 + $0x6c] sm:$0xf]
  %v46 = vld [vmem:[%s0 + $0x70] sm:$0xf]
  %v47 = vld [vmem:[%s0 + $0x74] sm:$0xf]
  %v48 = vld [vmem:[%s0 + $0x78] sm:$0xf]
  %v49 = vld [vmem:[%s0 + $0x7c] sm:$0xf]
  %v50 = vld [vmem:[%s0 + $0x80] sm:$0xf]
  %v51 = vld [vmem:[%s0 + $0x84] sm:$0xf]
  %v52 = vld [vmem:[%s0 + $0x88] sm:$0xf]
  %v53 = vld [vmem:[%s0 + $0x8c] sm:$0xf]
  %v54 = vld [vmem:[%s0 + $0x90] sm:$0xf]
  %v55 = vld [vmem:[%s0 + $0x94] sm:$0xf]
  %v56 = vld [vmem:[%s0 + $0x98] sm:$0xf]
  %v57 = vld [vmem:[%s0 + $0x9c] sm:$0xf]
  %v58 = vld [vmem:[%s0 + $0xa0] sm:$0xf]
  %v59 = vld [vmem:[%s0 + $0xa4] sm:$0xf]
  %v60 = vld [vmem:[%s0 + $0xa8] sm:$0xf]
  %v61 = vld [vmem:[%s0 + $0xac] sm:$0xf]
  %v62 = vld [vmem:[%s0 + $0xb0] sm:$0xf]
  %v63 = vld [vmem:[%s0 + $0xb4] sm:$0xf]
  %v64 = vld [vmem:[%s0 + $0xb8] sm:$0xf]
  %v65 = vld [vmem:[%s0 + $0xbc] sm:$0xf]
  %v66 = vld [vmem:[%s0 + $0xc0] sm:$0xf]
  %v67 = vld [vmem:[%s0 + $0xc4] sm:$0xf]
  %v68 = vld [vmem:[%s0 + $0xc8] sm:$0xf]
  %v69 = vld [vmem:[%s0 + $0xcc] sm:$0xf]
  %v70 = vld [vmem:[%s0 + $0xd0] sm:$0xf]
  %v71 = vld [vmem:[%s0 + $0xd4] sm:$0xf]
  %v72 = vld [vmem:[%s0 + $0xd8] sm:$0xf]
  %v73 = vld [vmem:[%s0 + $0xdc] sm:$0xf]
  %v74 = vld [vmem:[%s0 + $0xe0] sm:$0xf]
  %v75 = vld [vmem:[%s0 + $0xe4] sm:$0xf]
  %v76 = vld [vmem:[%s0 + $0xe8] sm:$0xf]
  %v77 = vld [vmem:[%s0 + $0xec] sm:$0xf]
  %v78 = vld [vmem:[%s0 + $0xf0] sm:$0xf]
  %v79 = vld [vmem:[%s0 + $0xf4] sm:$0xf]
  %v80 = vld [vmem:[%s0 + $0xf8] sm:$0xf]
  %v81 = vld [vmem:[%s0 + $0xfc] sm:$0xf]
  %v82 = vld [vmem:[%s1] sm:$0xf]
  %v83 = vld [vmem:[%s1 + $0x4] sm:$0xf]
  %v148 = vunpack.c.l.b16 %v18
  %v149 = vunpack.c.l.b16 %v19
  %v150 = vunpack.c.l.b16 %v20
  %v151 = vunpack.c.l.b16 %v21
  %v152 = vunpack.c.l.b16 %v22
  %v153 = vunpack.c.l.b16 %v23
  %v154 = vunpack.c.l.b16 %v24
  %v155 = vunpack.c.l.b16 %v25
  %v156 = vunpack.c.l.b16 %v26
  %v157 = vunpack.c.l.b16 %v27
  %v158 = vunpack.c.l.b16 %v28
  %v159 = vunpack.c.l.b16 %v29
  %v160 = vunpack.c.l.b16 %v30
  %v161 = vunpack.c.l.b16 %v31
  %v162 = vunpack.c.l.b16 %v32
  %v163 = vunpack.c.l.b16 %v33
  %v164 = vunpack.c.l.b16 %v34
  %v165 = vunpack.c.l.b16 %v35
  %v166 = vunpack.c.l.b16 %v36
  %v167 = vunpack.c.l.b16 %v37
  %v168 = vunpack.c.l.b16 %v38
  %v169 = vunpack.c.l.b16 %v39
  %v170 = vunpack.c.l.b16 %v40
  %v171 = vunpack.c.l.b16 %v41
  %v172 = vunpack.c.l.b16 %v42
  %v173 = vunpack.c.l.b16 %v43
  %v174 = vunpack.c.l.b16 %v44
  %v175 = vunpack.c.l.b16 %v45
  %v176 = vunpack.c.l.b16 %v46
  %v177 = vunpack.c.l.b16 %v47
  %v178 = vunpack.c.l.b16 %v48
  %v179 = vunpack.c.l.b16 %v49
  %v180 = vunpack.c.l.b16 %v50
  %v181 = vunpack.c.l.b16 %v51
  %v182 = vunpack.c.l.b16 %v52
  %v183 = vunpack.c.l.b16 %v53
  %v184 = vunpack.c.l.b16 %v54
  %v185 = vunpack.c.l.b16 %v55
  %v186 = vunpack.c.l.b16 %v56
  %v187 = vunpack.c.l.b16 %v57
  %v188 = vunpack.c.l.b16 %v58
  %v189 = vunpack.c.l.b16 %v59
  %v190 = vunpack.c.l.b16 %v60
  %v191 = vunpack.c.l.b16 %v61
  %v192 = vunpack.c.l.b16 %v62
  %v193 = vunpack.c.l.b16 %v63
  %v194 = vunpack.c.l.b16 %v64
  %v195 = vunpack.c.l.b16 %v65
  %v196 = vunpack.c.l.b16 %v66
  %v197 = vunpack.c.l.b16 %v67
  %v198 = vunpack.c.l.b16 %v68
  %v199 = vunpack.c.l.b16 %v69
  %v200 = vunpack.c.l.b16 %v70
  %v201 = vunpack.c.l.b16 %v71
  %v202 = vunpack.c.l.b16 %v72
  %v203 = vunpack.c.l.b16 %v73
  %v204 = vunpack.c.l.b16 %v74
  %v205 = vunpack.c.l.b16 %v75
  %v206 = vunpack.c.l.b16 %v76
  %v207 = vunpack.c.l.b16 %v77
  %v208 = vunpack.c.l.b16 %v78
  %v209 = vunpack.c.l.b16 %v79
  %v210 = vunpack.c.l.b16 %v80
  %v211 = vunpack.c.l.b16 %v81
  %v212 = vpack.c.b16 %v149, %v148
  %v213 = vpack.c.b16 %v151, %v150
  %v214 = vpack.c.b16 %v153, %v152
  %v215 = vpack.c.b16 %v155, %v154
  %v216 = vpack.c.b16 %v157, %v156
  %v217 = vpack.c.b16 %v159, %v158
  %v218 = vpack.c.b16 %v161, %v160
  %v219 = vpack.c.b16 %v163, %v162
  %v220 = vpack.c.b16 %v165, %v164
  %v221 = vpack.c.b16 %v167, %v166
  %v222 = vpack.c.b16 %v169, %v168
  %v223 = vpack.c.b16 %v171, %v170
  %v224 = vpack.c.b16 %v173, %v172
  %v225 = vpack.c.b16 %v175, %v174
  %v226 = vpack.c.b16 %v177, %v176
  %v227 = vpack.c.b16 %v179, %v178
  %v228 = vpack.c.b16 %v181, %v180
  %v229 = vpack.c.b16 %v183, %v182
  %v230 = vpack.c.b16 %v185, %v184
  %v231 = vpack.c.b16 %v187, %v186
  %v232 = vpack.c.b16 %v189, %v188
  %v233 = vpack.c.b16 %v191, %v190
  %v234 = vpack.c.b16 %v193, %v192
  %v235 = vpack.c.b16 %v195, %v194
  %v236 = vpack.c.b16 %v197, %v196
  %v237 = vpack.c.b16 %v199, %v198
  %v238 = vpack.c.b16 %v201, %v200
  %v239 = vpack.c.b16 %v203, %v202
  %v240 = vpack.c.b16 %v205, %v204
  %v241 = vpack.c.b16 %v207, %v206
  %v242 = vpack.c.b16 %v209, %v208
  %v243 = vpack.c.b16 %v211, %v210
  %v246 = vunpack.c.l.b16 %v82
  %v247 = vunpack.c.l.b16 %v83
  %v248 = vpack.c.b16 %v247, %v246
  %vm250 = vcmask 130048
  %v252 = vsel %vm250, %v212, 0
  %v255 = vsel %vm250, %v213, 0
  %v258 = vsel %vm250, %v214, 0
  %v261 = vsel %vm250, %v215, 0
  %v264 = vsel %vm250, %v216, 0
  %v267 = vsel %vm250, %v217, 0
  %v270 = vsel %vm250, %v218, 0
  %v273 = vsel %vm250, %v219, 0
  %v276 = vsel %vm250, %v220, 0
  %v279 = vsel %vm250, %v221, 0
  %v282 = vsel %vm250, %v222, 0
  %v285 = vsel %vm250, %v223, 0
  %v288 = vsel %vm250, %v224, 0
  %v291 = vsel %vm250, %v225, 0
  %v294 = vsel %vm250, %v226, 0
  %v297 = vsel %vm250, %v227, 0
  %v300 = vsel %vm250, %v228, 0
  %v303 = vsel %vm250, %v229, 0
  %v306 = vsel %vm250, %v230, 0
  %v309 = vsel %vm250, %v231, 0
  %v312 = vsel %vm250, %v232, 0
  %v315 = vsel %vm250, %v233, 0
  %v318 = vsel %vm250, %v234, 0
  %v321 = vsel %vm250, %v235, 0
  %v324 = vsel %vm250, %v236, 0
  %v327 = vsel %vm250, %v237, 0
  %v330 = vsel %vm250, %v238, 0
  %v333 = vsel %vm250, %v239, 0
  %v336 = vsel %vm250, %v240, 0
  %v339 = vsel %vm250, %v241, 0
  %v342 = vsel %vm250, %v242, 0
  %v345 = vsel %vm250, %v243, 0
  %347 = vmatprep.subr.bf16.mxu0 0
  %348 = vmatpush1.bf16.msra.mxu0 %v248
  %349 = vmatprep.subr.bf16.mxu0 0
  %350 = vmatpush1.bf16.msra.mxu0 0
  %351 = vmatprep.subr.bf16.mxu0 0
  %352 = vmatpush1.bf16.msra.mxu0 0
  %353 = vmatprep.subr.bf16.mxu0 0
  %354 = vmatpush1.bf16.msra.mxu0 0
  %355 = vmatprep.subr.bf16.mxu0 0
  %356 = vmatpush1.bf16.msra.mxu0 0
  %357 = vmatprep.subr.bf16.mxu0 0
  %358 = vmatpush1.bf16.msra.mxu0 0
  %359 = vmatprep.subr.bf16.mxu0 0
  %360 = vmatpush1.bf16.msra.mxu0 0
  %361 = vmatprep.subr.bf16.mxu0 0
  %362 = vmatpush1.bf16.msra.mxu0 0
  %363 = vmatprep.subr.bf16.mxu0 0
  %364 = vmatpush1.bf16.msra.mxu0 0
  %365 = vmatprep.subr.bf16.mxu0 0
  %366 = vmatpush1.bf16.msra.mxu0 0
  %367 = vmatprep.subr.bf16.mxu0 0
  %368 = vmatpush1.bf16.msra.mxu0 0
  %369 = vmatprep.subr.bf16.mxu0 0
  %370 = vmatpush1.bf16.msra.mxu0 0
  %371 = vmatprep.subr.bf16.mxu0 0
  %372 = vmatpush1.bf16.msra.mxu0 0
  %373 = vmatprep.subr.bf16.mxu0 0
  %374 = vmatpush1.bf16.msra.mxu0 0
  %375 = vmatprep.subr.bf16.mxu0 0
  %376 = vmatpush1.bf16.msra.mxu0 0
  %377 = vmatprep.subr.bf16.mxu0 0
  %378 = vmatpush1.bf16.msra.mxu0 0
  %379 = vmatprep.mubr.bf16.mxu0 0
  %380 = vmatmul.mubr.bf16.gmra.mrb[0].mxu0 %v252
  %v381 = vpop.f32.mrb[0].mxu0
  %v382 = vadd.f32 0.0, %v381
  %v383 = vpop.f32.mrb[0].mxu0
  %v384 = vpop.f32.mrb[0].mxu0
  %v385 = vadd.f32 0.0, %v384
  %v386 = vpop.f32.mrb[0].mxu0
  %387 = vmatprep.mubr.bf16.mxu0 0
  %388 = vmatmul.mubr.bf16.gmra.mrb[0].mxu0 %v255
  %v389 = vpop.f32.mrb[0].mxu0
  %v390 = vadd.f32 0.0, %v389
  %v391 = vpop.f32.mrb[0].mxu0
  %v392 = vpop.f32.mrb[0].mxu0
  %v393 = vadd.f32 0.0, %v392
  %v394 = vpop.f32.mrb[0].mxu0
  %395 = vmatprep.mubr.bf16.mxu0 0
  %396 = vmatmul.mubr.bf16.gmra.mrb[0].mxu0 %v258
  %v397 = vpop.f32.mrb[0].mxu0
  %v398 = vadd.f32 0.0, %v397
  %v399 = vpop.f32.mrb[0].mxu0
  %v400 = vpop.f32.mrb[0].mxu0
  %v401 = vadd.f32 0.0, %v400
  %v402 = vpop.f32.mrb[0].mxu0
  %403 = vmatprep.mubr.bf16.mxu0 0
  %404 = vmatmul.mubr.bf16.gmra.mrb[0].mxu0 %v261
  %v405 = vpop.f32.mrb[0].mxu0
  %v406 = vadd.f32 0.0, %v405
  %v407 = vpop.f32.mrb[0].mxu0
  %v408 = vpop.f32.mrb[0].mxu0
  %v409 = vadd.f32 0.0, %v408
  %v410 = vpop.f32.mrb[0].mxu0
  %411 = vmatprep.mubr.bf16.mxu0 0
  %412 = vmatmul.mubr.bf16.gmra.mrb[0].mxu0 %v264
  %v413 = vpop.f32.mrb[0].mxu0
  %v414 = vadd.f32 0.0, %v413
  %v415 = vpop.f32.mrb[0].mxu0
  %v416 = vpop.f32.mrb[0].mxu0
  %v417 = vadd.f32 0.0, %v416
  %v418 = vpop.f32.mrb[0].mxu0
  %419 = vmatprep.mubr.bf16.mxu0 0
  %420 = vmatmul.mubr.bf16.gmra.mrb[0].mxu0 %v267
  %v421 = vpop.f32.mrb[0].mxu0
  %v422 = vadd.f32 0.0, %v421
  %v423 = vpop.f32.mrb[0].mxu0
  %v424 = vpop.f32.mrb[0].mxu0
  %v425 = vadd.f32 0.0, %v424
  %v426 = vpop.f32.mrb[0].mxu0
  %427 = vmatprep.mubr.bf16.mxu0 0
  %428 = vmatmul.mubr.bf16.gmra.mrb[0].mxu0 %v270
  %v429 = vpop.f32.mrb[0].mxu0
  %v430 = vadd.f32 0.0, %v429
  %v431 = vpop.f32.mrb[0].mxu0
  %v432 = vpop.f32.mrb[0].mxu0
  %v433 = vadd.f32 0.0, %v432
  %v434 = vpop.f32.mrb[0].mxu0
  %435 = vmatprep.mubr.bf16.mxu0 0
  %436 = vmatmul.mubr.bf16.gmra.mrb[0].mxu0 %v273
  %v437 = vpop.f32.mrb[0].mxu0
  %v438 = vadd.f32 0.0, %v437
  %v439 = vpop.f32.mrb[0].mxu0
  %v440 = vpop.f32.mrb[0].mxu0
  %v441 = vadd.f32 0.0, %v440
  %v442 = vpop.f32.mrb[0].mxu0
  %443 = vmatprep.mubr.bf16.mxu0 0
  %444 = vmatmul.mubr.bf16.gmra.mrb[0].mxu0 %v276
  %v445 = vpop.f32.mrb[0].mxu0
  %v446 = vadd.f32 0.0, %v445
  %v447 = vpop.f32.mrb[0].mxu0
  %v448 = vpop.f32.mrb[0].mxu0
  %v449 = vadd.f32 0.0, %v448
  %v450 = vpop.f32.mrb[0].mxu0
  %451 = vmatprep.mubr.bf16.mxu0 0
  %452 = vmatmul.mubr.bf16.gmra.mrb[0].mxu0 %v279
  %v453 = vpop.f32.mrb[0].mxu0
  %v454 = vadd.f32 0.0, %v453
  %v455 = vpop.f32.mrb[0].mxu0
  %v456 = vpop.f32.mrb[0].mxu0
  %v457 = vadd.f32 0.0, %v456
  %v458 = vpop.f32.mrb[0].mxu0
  %459 = vmatprep.mubr.bf16.mxu0 0
  %460 = vmatmul.mubr.bf16.gmra.mrb[0].mxu0 %v282
  %v461 = vpop.f32.mrb[0].mxu0
  %v462 = vadd.f32 0.0, %v461
  %v463 = vpop.f32.mrb[0].mxu0
  %v464 = vpop.f32.mrb[0].mxu0
  %v465 = vadd.f32 0.0, %v464
  %v466 = vpop.f32.mrb[0].mxu0
  %467 = vmatprep.mubr.bf16.mxu0 0
  %468 = vmatmul.mubr.bf16.gmra.mrb[0].mxu0 %v285
  %v469 = vpop.f32.mrb[0].mxu0
  %v470 = vadd.f32 0.0, %v469
  %v471 = vpop.f32.mrb[0].mxu0
  %v472 = vpop.f32.mrb[0].mxu0
  %v473 = vadd.f32 0.0, %v472
  %v474 = vpop.f32.mrb[0].mxu0
  %475 = vmatprep.mubr.bf16.mxu0 0
  %476 = vmatmul.mubr.bf16.gmra.mrb[0].mxu0 %v288
  %v477 = vpop.f32.mrb[0].mxu0
  %v478 = vadd.f32 0.0, %v477
  %v479 = vpop.f32.mrb[0].mxu0
  %v480 = vpop.f32.mrb[0].mxu0
  %v481 = vadd.f32 0.0, %v480
  %v482 = vpop.f32.mrb[0].mxu0
  %483 = vmatprep.mubr.bf16.mxu0 0
  %484 = vmatmul.mubr.bf16.gmra.mrb[0].mxu0 %v291
  %v485 = vpop.f32.mrb[0].mxu0
  %v486 = vadd.f32 0.0, %v485
  %v487 = vpop.f32.mrb[0].mxu0
  %v488 = vpop.f32.mrb[0].mxu0
  %v489 = vadd.f32 0.0, %v488
  %v490 = vpop.f32.mrb[0].mxu0
  %491 = vmatprep.mubr.bf16.mxu0 0
  %492 = vmatmul.mubr.bf16.gmra.mrb[0].mxu0 %v294
  %v493 = vpop.f32.mrb[0].mxu0
  %v494 = vadd.f32 0.0, %v493
  %v495 = vpop.f32.mrb[0].mxu0
  %v496 = vpop.f32.mrb[0].mxu0
  %v497 = vadd.f32 0.0, %v496
  %v498 = vpop.f32.mrb[0].mxu0
  %499 = vmatprep.mubr.bf16.mxu0 0
  %500 = vmatmul.mubr.bf16.gmra.mrb[0].mxu0 %v297
  %v501 = vpop.f32.mrb[0].mxu0
  %v502 = vadd.f32 0.0, %v501
  %v503 = vpop.f32.mrb[0].mxu0
  %v504 = vpop.f32.mrb[0].mxu0
  %v505 = vadd.f32 0.0, %v504
  %v506 = vpop.f32.mrb[0].mxu0
  %507 = vmatprep.mubr.bf16.mxu0 0
  %508 = vmatmul.mubr.bf16.gmra.mrb[0].mxu0 %v300
  %v509 = vpop.f32.mrb[0].mxu0
  %v510 = vadd.f32 0.0, %v509
  %v511 = vpop.f32.mrb[0].mxu0
  %v512 = vpop.f32.mrb[0].mxu0
  %v513 = vadd.f32 0.0, %v512
  %v514 = vpop.f32.mrb[0].mxu0
  %515 = vmatprep.mubr.bf16.mxu0 0
  %516 = vmatmul.mubr.bf16.gmra.mrb[0].mxu0 %v303
  %v517 = vpop.f32.mrb[0].mxu0
  %v518 = vadd.f32 0.0, %v517
  %v519 = vpop.f32.mrb[0].mxu0
  %v520 = vpop.f32.mrb[0].mxu0
  %v521 = vadd.f32 0.0, %v520
  %v522 = vpop.f32.mrb[0].mxu0
  %523 = vmatprep.mubr.bf16.mxu0 0
  %524 = vmatmul.mubr.bf16.gmra.mrb[0].mxu0 %v306
  %v525 = vpop.f32.mrb[0].mxu0
  %v526 = vadd.f32 0.0, %v525
  %v527 = vpop.f32.mrb[0].mxu0
  %v528 = vpop.f32.mrb[0].mxu0
  %v529 = vadd.f32 0.0, %v528
  %v530 = vpop.f32.mrb[0].mxu0
  %531 = vmatprep.mubr.bf16.mxu0 0
  %532 = vmatmul.mubr.bf16.gmra.mrb[0].mxu0 %v309
  %v533 = vpop.f32.mrb[0].mxu0
  %v534 = vadd.f32 0.0, %v533
  %v535 = vpop.f32.mrb[0].mxu0
  %v536 = vpop.f32.mrb[0].mxu0
  %v537 = vadd.f32 0.0, %v536
  %v538 = vpop.f32.mrb[0].mxu0
  %539 = vmatprep.mubr.bf16.mxu0 0
  %540 = vmatmul.mubr.bf16.gmra.mrb[0].mxu0 %v312
  %v541 = vpop.f32.mrb[0].mxu0
  %v542 = vadd.f32 0.0, %v541
  %v543 = vpop.f32.mrb[0].mxu0
  %v544 = vpop.f32.mrb[0].mxu0
  %v545 = vadd.f32 0.0, %v544
  %v546 = vpop.f32.mrb[0].mxu0
  %547 = vmatprep.mubr.bf16.mxu0 0
  %548 = vmatmul.mubr.bf16.gmra.mrb[0].mxu0 %v315
  %v549 = vpop.f32.mrb[0].mxu0
  %v550 = vadd.f32 0.0, %v549
  %v551 = vpop.f32.mrb[0].mxu0
  %v552 = vpop.f32.mrb[0].mxu0
  %v553 = vadd.f32 0.0, %v552
  %v554 = vpop.f32.mrb[0].mxu0
  %555 = vmatprep.mubr.bf16.mxu0 0
  %556 = vmatmul.mubr.bf16.gmra.mrb[0].mxu0 %v318
  %v557 = vpop.f32.mrb[0].mxu0
  %v558 = vadd.f32 0.0, %v557
  %v559 = vpop.f32.mrb[0].mxu0
  %v560 = vpop.f32.mrb[0].mxu0
  %v561 = vadd.f32 0.0, %v560
  %v562 = vpop.f32.mrb[0].mxu0
  %563 = vmatprep.mubr.bf16.mxu0 0
  %564 = vmatmul.mubr.bf16.gmra.mrb[0].mxu0 %v321
  %v565 = vpop.f32.mrb[0].mxu0
  %v566 = vadd.f32 0.0, %v565
  %v567 = vpop.f32.mrb[0].mxu0
  %v568 = vpop.f32.mrb[0].mxu0
  %v569 = vadd.f32 0.0, %v568
  %v570 = vpop.f32.mrb[0].mxu0
  %571 = vmatprep.mubr.bf16.mxu0 0
  %572 = vmatmul.mubr.bf16.gmra.mrb[0].mxu0 %v324
  %v573 = vpop.f32.mrb[0].mxu0
  %v574 = vadd.f32 0.0, %v573
  %v575 = vpop.f32.mrb[0].mxu0
  %v576 = vpop.f32.mrb[0].mxu0
  %v577 = vadd.f32 0.0, %v576
  %v578 = vpop.f32.mrb[0].mxu0
  %579 = vmatprep.mubr.bf16.mxu0 0
  %580 = vmatmul.mubr.bf16.gmra.mrb[0].mxu0 %v327
  %v581 = vpop.f32.mrb[0].mxu0
  %v582 = vadd.f32 0.0, %v581
  %v583 = vpop.f32.mrb[0].mxu0
  %v584 = vpop.f32.mrb[0].mxu0
  %v585 = vadd.f32 0.0, %v584
  %v586 = vpop.f32.mrb[0].mxu0
  %587 = vmatprep.mubr.bf16.mxu0 0
  %588 = vmatmul.mubr.bf16.gmra.mrb[0].mxu0 %v330
  %v589 = vpop.f32.mrb[0].mxu0
  %v590 = vadd.f32 0.0, %v589
  %v591 = vpop.f32.mrb[0].mxu0
  %v592 = vpop.f32.mrb[0].mxu0
  %v593 = vadd.f32 0.0, %v592
  %v594 = vpop.f32.mrb[0].mxu0
  %595 = vmatprep.mubr.bf16.mxu0 0
  %596 = vmatmul.mubr.bf16.gmra.mrb[0].mxu0 %v333
  %v597 = vpop.f32.mrb[0].mxu0
  %v598 = vadd.f32 0.0, %v597
  %v599 = vpop.f32.mrb[0].mxu0
  %v600 = vpop.f32.mrb[0].mxu0
  %v601 = vadd.f32 0.0, %v600
  %v602 = vpop.f32.mrb[0].mxu0
  %603 = vmatprep.mubr.bf16.mxu0 0
  %604 = vmatmul.mubr.bf16.gmra.mrb[0].mxu0 %v336
  %v605 = vpop.f32.mrb[0].mxu0
  %v606 = vadd.f32 0.0, %v605
  %v607 = vpop.f32.mrb[0].mxu0
  %v608 = vpop.f32.mrb[0].mxu0
  %v609 = vadd.f32 0.0, %v608
  %v610 = vpop.f32.mrb[0].mxu0
  %611 = vmatprep.mubr.bf16.mxu0 0
  %612 = vmatmul.mubr.bf16.gmra.mrb[0].mxu0 %v339
  %v613 = vpop.f32.mrb[0].mxu0
  %v614 = vadd.f32 0.0, %v613
  %v615 = vpop.f32.mrb[0].mxu0
  %v616 = vpop.f32.mrb[0].mxu0
  %v617 = vadd.f32 0.0, %v616
  %v618 = vpop.f32.mrb[0].mxu0
  %619 = vmatprep.mubr.bf16.mxu0 0
  %620 = vmatmul.mubr.bf16.gmra.mrb[0].mxu0 %v342
  %v621 = vpop.f32.mrb[0].mxu0
  %v622 = vadd.f32 0.0, %v621
  %v623 = vpop.f32.mrb[0].mxu0
  %v624 = vpop.f32.mrb[0].mxu0
  %v625 = vadd.f32 0.0, %v624
  %v626 = vpop.f32.mrb[0].mxu0
  %627 = vmatprep.mubr.bf16.mxu0 0
  %628 = vmatmul.mubr.bf16.gmra.mrb[0].mxu0 %v345
  %v629 = vpop.f32.mrb[0].mxu0
  %v630 = vadd.f32 0.0, %v629
  %v631 = vpop.f32.mrb[0].mxu0
  %v632 = vpop.f32.mrb[0].mxu0
  %v633 = vadd.f32 0.0, %v632
  %v634 = vpop.f32.mrb[0].mxu0
  %635 = vdwg.mxu0
  %v636 = vld [vmem:[%s2] sm:$0x1]
  %v638 = vlaneseq
  %v639 = vshrl.u32 %v638, 7
  %v640 = vsub.s32 0, %v639
  %v641 = vrot.slane %v636, %v640
  %v643 = vmul.f32 %v382, %v641
  %v644 = vmul.f32 %v385, %v641
  %v645 = vmul.f32 %v390, %v641
  %v646 = vmul.f32 %v393, %v641
  %v647 = vmul.f32 %v398, %v641
  %v648 = vmul.f32 %v401, %v641
  %v649 = vmul.f32 %v406, %v641
  %v650 = vmul.f32 %v409, %v641
  %v651 = vmul.f32 %v414, %v641
  %v652 = vmul.f32 %v417, %v641
  %v653 = vmul.f32 %v422, %v641
  %v654 = vmul.f32 %v425, %v641
  %v655 = vmul.f32 %v430, %v641
  %v656 = vmul.f32 %v433, %v641
  %v657 = vmul.f32 %v438, %v641
  %v658 = vmul.f32 %v441, %v641
  %v659 = vmul.f32 %v446, %v641
  %v660 = vmul.f32 %v449, %v641
  %v661 = vmul.f32 %v454, %v641
  %v662 = vmul.f32 %v457, %v641
  %v663 = vmul.f32 %v462, %v641
  %v664 = vmul.f32 %v465, %v641
  %v665 = vmul.f32 %v470, %v641
  %v666 = vmul.f32 %v473, %v641
  %v667 = vmul.f32 %v478, %v641
  %v668 = vmul.f32 %v481, %v641
  %v669 = vmul.f32 %v486, %v641
  %v670 = vmul.f32 %v489, %v641
  %v671 = vmul.f32 %v494, %v641
  %v672 = vmul.f32 %v497, %v641
  %v673 = vmul.f32 %v502, %v641
  %v674 = vmul.f32 %v505, %v641
  %v675 = vmul.f32 %v510, %v641
  %v676 = vmul.f32 %v513, %v641
  %v677 = vmul.f32 %v518, %v641
  %v678 = vmul.f32 %v521, %v641
  %v679 = vmul.f32 %v526, %v641
  %v680 = vmul.f32 %v529, %v641
  %v681 = vmul.f32 %v534, %v641
  %v682 = vmul.f32 %v537, %v641
  %v683 = vmul.f32 %v542, %v641
  %v684 = vmul.f32 %v545, %v641
  %v685 = vmul.f32 %v550, %v641
  %v686 = vmul.f32 %v553, %v641
  %v687 = vmul.f32 %v558, %v641
  %v688 = vmul.f32 %v561, %v641
  %v689 = vmul.f32 %v566, %v641
  %v690 = vmul.f32 %v569, %v641
  %v691 = vmul.f32 %v574, %v641
  %v692 = vmul.f32 %v577, %v641
  %v693 = vmul.f32 %v582, %v641
  %v694 = vmul.f32 %v585, %v641
  %v695 = vmul.f32 %v590, %v641
  %v696 = vmul.f32 %v593, %v641
  %v697 = vmul.f32 %v598, %v641
  %v698 = vmul.f32 %v601, %v641
  %v699 = vmul.f32 %v606, %v641
  %v700 = vmul.f32 %v609, %v641
  %v701 = vmul.f32 %v614, %v641
  %v702 = vmul.f32 %v617, %v641
  %v703 = vmul.f32 %v622, %v641
  %v704 = vmul.f32 %v625, %v641
  %v705 = vmul.f32 %v630, %v641
  %v706 = vmul.f32 %v633, %v641
  %v707 = vld [vmem:[%s3] sm:$0x1]
  %v709 = vlaneseq
  %v710 = vshrl.u32 %v709, 7
  %v711 = vsub.s32 0, %v710
  %v712 = vrot.slane %v707, %v711
  %v714 = vadd.f32 %v643, %v712
  %v715 = vadd.f32 %v644, %v712
  %v716 = vadd.f32 %v645, %v712
  %v717 = vadd.f32 %v646, %v712
  %v718 = vadd.f32 %v647, %v712
  %v719 = vadd.f32 %v648, %v712
  %v720 = vadd.f32 %v649, %v712
  %v721 = vadd.f32 %v650, %v712
  %v722 = vadd.f32 %v651, %v712
  %v723 = vadd.f32 %v652, %v712
  %v724 = vadd.f32 %v653, %v712
  %v725 = vadd.f32 %v654, %v712
  %v726 = vadd.f32 %v655, %v712
  %v727 = vadd.f32 %v656, %v712
  %v728 = vadd.f32 %v657, %v712
  %v729 = vadd.f32 %v658, %v712
  %v730 = vadd.f32 %v659, %v712
  %v731 = vadd.f32 %v660, %v712
  %v732 = vadd.f32 %v661, %v712
  %v733 = vadd.f32 %v662, %v712
  %v734 = vadd.f32 %v663, %v712
  %v735 = vadd.f32 %v664, %v712
  %v736 = vadd.f32 %v665, %v712
  %v737 = vadd.f32 %v666, %v712
  %v738 = vadd.f32 %v667, %v712
  %v739 = vadd.f32 %v668, %v712
  %v740 = vadd.f32 %v669, %v712
  %v741 = vadd.f32 %v670, %v712
  %v742 = vadd.f32 %v671, %v712
  %v743 = vadd.f32 %v672, %v712
  %v744 = vadd.f32 %v673, %v712
  %v745 = vadd.f32 %v674, %v712
  %v746 = vadd.f32 %v675, %v712
  %v747 = vadd.f32 %v676, %v712
  %v748 = vadd.f32 %v677, %v712
  %v749 = vadd.f32 %v678, %v712
  %v750 = vadd.f32 %v679, %v712
  %v751 = vadd.f32 %v680, %v712
  %v752 = vadd.f32 %v681, %v712
  %v753 = vadd.f32 %v682, %v712
  %v754 = vadd.f32 %v683, %v712
  %v755 = vadd.f32 %v684, %v712
  %v756 = vadd.f32 %v685, %v712
  %v757 = vadd.f32 %v686, %v712
  %v758 = vadd.f32 %v687, %v712
  %v759 = vadd.f32 %v688, %v712
  %v760 = vadd.f32 %v689, %v712
  %v761 = vadd.f32 %v690, %v712
  %v762 = vadd.f32 %v691, %v712
  %v763 = vadd.f32 %v692, %v712
  %v764 = vadd.f32 %v693, %v712
  %v765 = vadd.f32 %v694, %v712
  %v766 = vadd.f32 %v695, %v712
  %v767 = vadd.f32 %v696, %v712
  %v768 = vadd.f32 %v697, %v712
  %v769 = vadd.f32 %v698, %v712
  %v770 = vadd.f32 %v699, %v712
  %v771 = vadd.f32 %v700, %v712
  %v772 = vadd.f32 %v701, %v712
  %v773 = vadd.f32 %v702, %v712
  %v774 = vadd.f32 %v703, %v712
  %v775 = vadd.f32 %v704, %v712
  %v776 = vadd.f32 %v705, %v712
  %v777 = vadd.f32 %v706, %v712
  %vm778 = vcmp.ge.f32.partialorder %v714, 0.0
  %vm779 = vcmp.ge.f32.partialorder %v715, 0.0
  %vm780 = vcmp.ge.f32.partialorder %v716, 0.0
  %vm781 = vcmp.ge.f32.partialorder %v717, 0.0
  %vm782 = vcmp.ge.f32.partialorder %v718, 0.0
  %vm783 = vcmp.ge.f32.partialorder %v719, 0.0
  %vm784 = vcmp.ge.f32.partialorder %v720, 0.0
  %vm785 = vcmp.ge.f32.partialorder %v721, 0.0
  %vm786 = vcmp.ge.f32.partialorder %v722, 0.0
  %vm787 = vcmp.ge.f32.partialorder %v723, 0.0
  %vm788 = vcmp.ge.f32.partialorder %v724, 0.0
  %vm789 = vcmp.ge.f32.partialorder %v725, 0.0
  %vm790 = vcmp.ge.f32.partialorder %v726, 0.0
  %vm791 = vcmp.ge.f32.partialorder %v727, 0.0
  %vm792 = vcmp.ge.f32.partialorder %v728, 0.0
  %vm793 = vcmp.ge.f32.partialorder %v729, 0.0
  %vm794 = vcmp.ge.f32.partialorder %v730, 0.0
  %vm795 = vcmp.ge.f32.partialorder %v731, 0.0
  %vm796 = vcmp.ge.f32.partialorder %v732, 0.0
  %vm797 = vcmp.ge.f32.partialorder %v733, 0.0
  %vm798 = vcmp.ge.f32.partialorder %v734, 0.0
  %vm799 = vcmp.ge.f32.partialorder %v735, 0.0
  %vm800 = vcmp.ge.f32.partialorder %v736, 0.0
  %vm801 = vcmp.ge.f32.partialorder %v737, 0.0
  %vm802 = vcmp.ge.f32.partialorder %v738, 0.0
  %vm803 = vcmp.ge.f32.partialorder %v739, 0.0
  %vm804 = vcmp.ge.f32.partialorder %v740, 0.0
  %vm805 = vcmp.ge.f32.partialorder %v741, 0.0
  %vm806 = vcmp.ge.f32.partialorder %v742, 0.0
  %vm807 = vcmp.ge.f32.partialorder %v743, 0.0
  %vm808 = vcmp.ge.f32.partialorder %v744, 0.0
  %vm809 = vcmp.ge.f32.partialorder %v745, 0.0
  %vm810 = vcmp.ge.f32.partialorder %v746, 0.0
  %vm811 = vcmp.ge.f32.partialorder %v747, 0.0
  %vm812 = vcmp.ge.f32.partialorder %v748, 0.0
  %vm813 = vcmp.ge.f32.partialorder %v749, 0.0
  %vm814 = vcmp.ge.f32.partialorder %v750, 0.0
  %vm815 = vcmp.ge.f32.partialorder %v751, 0.0
  %vm816 = vcmp.ge.f32.partialorder %v752, 0.0
  %vm817 = vcmp.ge.f32.partialorder %v753, 0.0
  %vm818 = vcmp.ge.f32.partialorder %v754, 0.0
  %vm819 = vcmp.ge.f32.partialorder %v755, 0.0
  %vm820 = vcmp.ge.f32.partialorder %v756, 0.0
  %vm821 = vcmp.ge.f32.partialorder %v757, 0.0
  %vm822 = vcmp.ge.f32.partialorder %v758, 0.0
  %vm823 = vcmp.ge.f32.partialorder %v759, 0.0
  %vm824 = vcmp.ge.f32.partialorder %v760, 0.0
  %vm825 = vcmp.ge.f32.partialorder %v761, 0.0
  %vm826 = vcmp.ge.f32.partialorder %v762, 0.0
  %vm827 = vcmp.ge.f32.partialorder %v763, 0.0
  %vm828 = vcmp.ge.f32.partialorder %v764, 0.0
  %vm829 = vcmp.ge.f32.partialorder %v765, 0.0
  %vm830 = vcmp.ge.f32.partialorder %v766, 0.0
  %vm831 = vcmp.ge.f32.partialorder %v767, 0.0
  %vm832 = vcmp.ge.f32.partialorder %v768, 0.0
  %vm833 = vcmp.ge.f32.partialorder %v769, 0.0
  %vm834 = vcmp.ge.f32.partialorder %v770, 0.0
  %vm835 = vcmp.ge.f32.partialorder %v771, 0.0
  %vm836 = vcmp.ge.f32.partialorder %v772, 0.0
  %vm837 = vcmp.ge.f32.partialorder %v773, 0.0
  %vm838 = vcmp.ge.f32.partialorder %v774, 0.0
  %vm839 = vcmp.ge.f32.partialorder %v775, 0.0
  %vm840 = vcmp.ge.f32.partialorder %v776, 0.0
  %vm841 = vcmp.ge.f32.partialorder %v777, 0.0
  %v842 = vmul.f32 %v714, 0.2
  %v843 = vmul.f32 %v715, 0.2
  %v844 = vmul.f32 %v716, 0.2
  %v845 = vmul.f32 %v717, 0.2
  %v846 = vmul.f32 %v718, 0.2
  %v847 = vmul.f32 %v719, 0.2
  %v848 = vmul.f32 %v720, 0.2
  %v849 = vmul.f32 %v721, 0.2
  %v850 = vmul.f32 %v722, 0.2
  %v851 = vmul.f32 %v723, 0.2
  %v852 = vmul.f32 %v724, 0.2
  %v853 = vmul.f32 %v725, 0.2
  %v854 = vmul.f32 %v726, 0.2
  %v855 = vmul.f32 %v727, 0.2
  %v856 = vmul.f32 %v728, 0.2
  %v857 = vmul.f32 %v729, 0.2
  %v858 = vmul.f32 %v730, 0.2
  %v859 = vmul.f32 %v731, 0.2
  %v860 = vmul.f32 %v732, 0.2
  %v861 = vmul.f32 %v733, 0.2
  %v862 = vmul.f32 %v734, 0.2
  %v863 = vmul.f32 %v735, 0.2
  %v864 = vmul.f32 %v736, 0.2
  %v865 = vmul.f32 %v737, 0.2
  %v866 = vmul.f32 %v738, 0.2
  %v867 = vmul.f32 %v739, 0.2
  %v868 = vmul.f32 %v740, 0.2
  %v869 = vmul.f32 %v741, 0.2
  %v870 = vmul.f32 %v742, 0.2
  %v871 = vmul.f32 %v743, 0.2
  %v872 = vmul.f32 %v744, 0.2
  %v873 = vmul.f32 %v745, 0.2
  %v874 = vmul.f32 %v746, 0.2
  %v875 = vmul.f32 %v747, 0.2
  %v876 = vmul.f32 %v748, 0.2
  %v877 = vmul.f32 %v749, 0.2
  %v878 = vmul.f32 %v750, 0.2
  %v879 = vmul.f32 %v751, 0.2
  %v880 = vmul.f32 %v752, 0.2
  %v881 = vmul.f32 %v753, 0.2
  %v882 = vmul.f32 %v754, 0.2
  %v883 = vmul.f32 %v755, 0.2
  %v884 = vmul.f32 %v756, 0.2
  %v885 = vmul.f32 %v757, 0.2
  %v886 = vmul.f32 %v758, 0.2
  %v887 = vmul.f32 %v759, 0.2
  %v888 = vmul.f32 %v760, 0.2
  %v889 = vmul.f32 %v761, 0.2
  %v890 = vmul.f32 %v762, 0.2
  %v891 = vmul.f32 %v763, 0.2
  %v892 = vmul.f32 %v764, 0.2
  %v893 = vmul.f32 %v765, 0.2
  %v894 = vmul.f32 %v766, 0.2
  %v895 = vmul.f32 %v767, 0.2
  %v896 = vmul.f32 %v768, 0.2
  %v897 = vmul.f32 %v769, 0.2
  %v898 = vmul.f32 %v770, 0.2
  %v899 = vmul.f32 %v771, 0.2
  %v900 = vmul.f32 %v772, 0.2
  %v901 = vmul.f32 %v773, 0.2
  %v902 = vmul.f32 %v774, 0.2
  %v903 = vmul.f32 %v775, 0.2
  %v904 = vmul.f32 %v776, 0.2
  %v905 = vmul.f32 %v777, 0.2
  %v906 = vsel %vm778, %v714, %v842
  %v907 = vsel %vm779, %v715, %v843
  %v908 = vsel %vm780, %v716, %v844
  %v909 = vsel %vm781, %v717, %v845
  %v910 = vsel %vm782, %v718, %v846
  %v911 = vsel %vm783, %v719, %v847
  %v912 = vsel %vm784, %v720, %v848
  %v913 = vsel %vm785, %v721, %v849
  %v914 = vsel %vm786, %v722, %v850
  %v915 = vsel %vm787, %v723, %v851
  %v916 = vsel %vm788, %v724, %v852
  %v917 = vsel %vm789, %v725, %v853
  %v918 = vsel %vm790, %v726, %v854
  %v919 = vsel %vm791, %v727, %v855
  %v920 = vsel %vm792, %v728, %v856
  %v921 = vsel %vm793, %v729, %v857
  %v922 = vsel %vm794, %v730, %v858
  %v923 = vsel %vm795, %v731, %v859
  %v924 = vsel %vm796, %v732, %v860
  %v925 = vsel %vm797, %v733, %v861
  %v926 = vsel %vm798, %v734, %v862
  %v927 = vsel %vm799, %v735, %v863
  %v928 = vsel %vm800, %v736, %v864
  %v929 = vsel %vm801, %v737, %v865
  %v930 = vsel %vm802, %v738, %v866
  %v931 = vsel %vm803, %v739, %v867
  %v932 = vsel %vm804, %v740, %v868
  %v933 = vsel %vm805, %v741, %v869
  %v934 = vsel %vm806, %v742, %v870
  %v935 = vsel %vm807, %v743, %v871
  %v936 = vsel %vm808, %v744, %v872
  %v937 = vsel %vm809, %v745, %v873
  %v938 = vsel %vm810, %v746, %v874
  %v939 = vsel %vm811, %v747, %v875
  %v940 = vsel %vm812, %v748, %v876
  %v941 = vsel %vm813, %v749, %v877
  %v942 = vsel %vm814, %v750, %v878
  %v943 = vsel %vm815, %v751, %v879
  %v944 = vsel %vm816, %v752, %v880
  %v945 = vsel %vm817, %v753, %v881
  %v946 = vsel %vm818, %v754, %v882
  %v947 = vsel %vm819, %v755, %v883
  %v948 = vsel %vm820, %v756, %v884
  %v949 = vsel %vm821, %v757, %v885
  %v950 = vsel %vm822, %v758, %v886
  %v951 = vsel %vm823, %v759, %v887
  %v952 = vsel %vm824, %v760, %v888
  %v953 = vsel %vm825, %v761, %v889
  %v954 = vsel %vm826, %v762, %v890
  %v955 = vsel %vm827, %v763, %v891
  %v956 = vsel %vm828, %v764, %v892
  %v957 = vsel %vm829, %v765, %v893
  %v958 = vsel %vm830, %v766, %v894
  %v959 = vsel %vm831, %v767, %v895
  %v960 = vsel %vm832, %v768, %v896
  %v961 = vsel %vm833, %v769, %v897
  %v962 = vsel %vm834, %v770, %v898
  %v963 = vsel %vm835, %v771, %v899
  %v964 = vsel %vm836, %v772, %v900
  %v965 = vsel %vm837, %v773, %v901
  %v966 = vsel %vm838, %v774, %v902
  %v967 = vsel %vm839, %v775, %v903
  %v968 = vsel %vm840, %v776, %v904
  %v969 = vsel %vm841, %v777, %v905
  %v970 = vpack.c.bf16 %v907, %v906
  %v971 = vpack.c.bf16 %v909, %v908
  %v972 = vpack.c.bf16 %v911, %v910
  %v973 = vpack.c.bf16 %v913, %v912
  %v974 = vpack.c.bf16 %v915, %v914
  %v975 = vpack.c.bf16 %v917, %v916
  %v976 = vpack.c.bf16 %v919, %v918
  %v977 = vpack.c.bf16 %v921, %v920
  %v978 = vpack.c.bf16 %v923, %v922
  %v979 = vpack.c.bf16 %v925, %v924
  %v980 = vpack.c.bf16 %v927, %v926
  %v981 = vpack.c.bf16 %v929, %v928
  %v982 = vpack.c.bf16 %v931, %v930
  %v983 = vpack.c.bf16 %v933, %v932
  %v984 = vpack.c.bf16 %v935, %v934
  %v985 = vpack.c.bf16 %v937, %v936
  %v986 = vpack.c.bf16 %v939, %v938
  %v987 = vpack.c.bf16 %v941, %v940
  %v988 = vpack.c.bf16 %v943, %v942
  %v989 = vpack.c.bf16 %v945, %v944
  %v990 = vpack.c.bf16 %v947, %v946
  %v991 = vpack.c.bf16 %v949, %v948
  %v992 = vpack.c.bf16 %v951, %v950
  %v993 = vpack.c.bf16 %v953, %v952
  %v994 = vpack.c.bf16 %v955, %v954
  %v995 = vpack.c.bf16 %v957, %v956
  %v996 = vpack.c.bf16 %v959, %v958
  %v997 = vpack.c.bf16 %v961, %v960
  %v998 = vpack.c.bf16 %v963, %v962
  %v999 = vpack.c.bf16 %v965, %v964
  %v1000 = vpack.c.bf16 %v967, %v966
  %v1001 = vpack.c.bf16 %v969, %v968
  %v1034 = vunpack.c.l.b16 %v970
  %v1035 = vunpack.c.h.b16 %v970
  %v1036 = vunpack.c.l.b16 %v971
  %v1037 = vunpack.c.h.b16 %v971
  %v1038 = vunpack.c.l.b16 %v972
  %v1039 = vunpack.c.h.b16 %v972
  %v1040 = vunpack.c.l.b16 %v973
  %v1041 = vunpack.c.h.b16 %v973
  %v1042 = vunpack.c.l.b16 %v974
  %v1043 = vunpack.c.h.b16 %v974
  %v1044 = vunpack.c.l.b16 %v975
  %v1045 = vunpack.c.h.b16 %v975
  %v1046 = vunpack.c.l.b16 %v976
  %v1047 = vunpack.c.h.b16 %v976
  %v1048 = vunpack.c.l.b16 %v977
  %v1049 = vunpack.c.h.b16 %v977
  %v1050 = vunpack.c.l.b16 %v978
  %v1051 = vunpack.c.h.b16 %v978
  %v1052 = vunpack.c.l.b16 %v979
  %v1053 = vunpack.c.h.b16 %v979
  %v1054 = vunpack.c.l.b16 %v980
  %v1055 = vunpack.c.h.b16 %v980
  %v1056 = vunpack.c.l.b16 %v981
  %v1057 = vunpack.c.h.b16 %v981
  %v1058 = vunpack.c.l.b16 %v982
  %v1059 = vunpack.c.h.b16 %v982
  %v1060 = vunpack.c.l.b16 %v983
  %v1061 = vunpack.c.h.b16 %v983
  %v1062 = vunpack.c.l.b16 %v984
  %v1063 = vunpack.c.h.b16 %v984
  %v1064 = vunpack.c.l.b16 %v985
  %v1065 = vunpack.c.h.b16 %v985
  %v1066 = vunpack.c.l.b16 %v986
  %v1067 = vunpack.c.h.b16 %v986
  %v1068 = vunpack.c.l.b16 %v987
  %v1069 = vunpack.c.h.b16 %v987
  %v1070 = vunpack.c.l.b16 %v988
  %v1071 = vunpack.c.h.b16 %v988
  %v1072 = vunpack.c.l.b16 %v989
  %v1073 = vunpack.c.h.b16 %v989
  %v1074 = vunpack.c.l.b16 %v990
  %v1075 = vunpack.c.h.b16 %v990
  %v1076 = vunpack.c.l.b16 %v991
  %v1077 = vunpack.c.h.b16 %v991
  %v1078 = vunpack.c.l.b16 %v992
  %v1079 = vunpack.c.h.b16 %v992
  %v1080 = vunpack.c.l.b16 %v993
  %v1081 = vunpack.c.h.b16 %v993
  %v1082 = vunpack.c.l.b16 %v994
  %v1083 = vunpack.c.h.b16 %v994
  %v1084 = vunpack.c.l.b16 %v995
  %v1085 = vunpack.c.h.b16 %v995
  %v1086 = vunpack.c.l.b16 %v996
  %v1087 = vunpack.c.h.b16 %v996
  %v1088 = vunpack.c.l.b16 %v997
  %v1089 = vunpack.c.h.b16 %v997
  %v1090 = vunpack.c.l.b16 %v998
  %v1091 = vunpack.c.h.b16 %v998
  %v1092 = vunpack.c.l.b16 %v999
  %v1093 = vunpack.c.h.b16 %v999
  %v1094 = vunpack.c.l.b16 %v1000
  %v1095 = vunpack.c.h.b16 %v1000
  %v1096 = vunpack.c.l.b16 %v1001
  %v1097 = vunpack.c.h.b16 %v1001
  %v1098 = vpack.c.b16 %v1034, %v1034
  %v1099 = vpack.c.b16 %v1035, %v1035
  %v1100 = vpack.c.b16 %v1036, %v1036
  %v1101 = vpack.c.b16 %v1037, %v1037
  %v1102 = vpack.c.b16 %v1038, %v1038
  %v1103 = vpack.c.b16 %v1039, %v1039
  %v1104 = vpack.c.b16 %v1040, %v1040
  %v1105 = vpack.c.b16 %v1041, %v1041
  %v1106 = vpack.c.b16 %v1042, %v1042
  %v1107 = vpack.c.b16 %v1043, %v1043
  %v1108 = vpack.c.b16 %v1044, %v1044
  %v1109 = vpack.c.b16 %v1045, %v1045
  %v1110 = vpack.c.b16 %v1046, %v1046
  %v1111 = vpack.c.b16 %v1047, %v1047
  %v1112 = vpack.c.b16 %v1048, %v1048
  %v1113 = vpack.c.b16 %v1049, %v1049
  %v1114 = vpack.c.b16 %v1050, %v1050
  %v1115 = vpack.c.b16 %v1051, %v1051
  %v1116 = vpack.c.b16 %v1052, %v1052
  %v1117 = vpack.c.b16 %v1053, %v1053
  %v1118 = vpack.c.b16 %v1054, %v1054
  %v1119 = vpack.c.b16 %v1055, %v1055
  %v1120 = vpack.c.b16 %v1056, %v1056
  %v1121 = vpack.c.b16 %v1057, %v1057
  %v1122 = vpack.c.b16 %v1058, %v1058
  %v1123 = vpack.c.b16 %v1059, %v1059
  %v1124 = vpack.c.b16 %v1060, %v1060
  %v1125 = vpack.c.b16 %v1061, %v1061
  %v1126 = vpack.c.b16 %v1062, %v1062
  %v1127 = vpack.c.b16 %v1063, %v1063
  %v1128 = vpack.c.b16 %v1064, %v1064
  %v1129 = vpack.c.b16 %v1065, %v1065
  %v1130 = vpack.c.b16 %v1066, %v1066
  %v1131 = vpack.c.b16 %v1067, %v1067
  %v1132 = vpack.c.b16 %v1068, %v1068
  %v1133 = vpack.c.b16 %v1069, %v1069
  %v1134 = vpack.c.b16 %v1070, %v1070
  %v1135 = vpack.c.b16 %v1071, %v1071
  %v1136 = vpack.c.b16 %v1072, %v1072
  %v1137 = vpack.c.b16 %v1073, %v1073
  %v1138 = vpack.c.b16 %v1074, %v1074
  %v1139 = vpack.c.b16 %v1075, %v1075
  %v1140 = vpack.c.b16 %v1076, %v1076
  %v1141 = vpack.c.b16 %v1077, %v1077
  %v1142 = vpack.c.b16 %v1078, %v1078
  %v1143 = vpack.c.b16 %v1079, %v1079
  %v1144 = vpack.c.b16 %v1080, %v1080
  %v1145 = vpack.c.b16 %v1081, %v1081
  %v1146 = vpack.c.b16 %v1082, %v1082
  %v1147 = vpack.c.b16 %v1083, %v1083
  %v1148 = vpack.c.b16 %v1084, %v1084
  %v1149 = vpack.c.b16 %v1085, %v1085
  %v1150 = vpack.c.b16 %v1086, %v1086
  %v1151 = vpack.c.b16 %v1087, %v1087
  %v1152 = vpack.c.b16 %v1088, %v1088
  %v1153 = vpack.c.b16 %v1089, %v1089
  %v1154 = vpack.c.b16 %v1090, %v1090
  %v1155 = vpack.c.b16 %v1091, %v1091
  %v1156 = vpack.c.b16 %v1092, %v1092
  %v1157 = vpack.c.b16 %v1093, %v1093
  %v1158 = vpack.c.b16 %v1094, %v1094
  %v1159 = vpack.c.b16 %v1095, %v1095
  %v1160 = vpack.c.b16 %v1096, %v1096
  %v1161 = vpack.c.b16 %v1097, %v1097
  %1226 = vst [vmem:[%s4] sm:$0xf] %v1098
  %1227 = vst [vmem:[%s4 + $0x4] sm:$0xf] %v1099
  %1228 = vst [vmem:[%s4 + $0x8] sm:$0xf] %v1100
  %1229 = vst [vmem:[%s4 + $0xc] sm:$0xf] %v1101
  %1230 = vst [vmem:[%s4 + $0x10] sm:$0xf] %v1102
  %1231 = vst [vmem:[%s4 + $0x14] sm:$0xf] %v1103
  %1232 = vst [vmem:[%s4 + $0x18] sm:$0xf] %v1104
  %1233 = vst [vmem:[%s4 + $0x1c] sm:$0xf] %v1105
  %1234 = vst [vmem:[%s4 + $0x20] sm:$0xf] %v1106
  %1235 = vst [vmem:[%s4 + $0x24] sm:$0xf] %v1107
  %1236 = vst [vmem:[%s4 + $0x28] sm:$0xf] %v1108
  %1237 = vst [vmem:[%s4 + $0x2c] sm:$0xf] %v1109
  %1238 = vst [vmem:[%s4 + $0x30] sm:$0xf] %v1110
  %1239 = vst [vmem:[%s4 + $0x34] sm:$0xf] %v1111
  %1240 = vst [vmem:[%s4 + $0x38] sm:$0xf] %v1112
  %1241 = vst [vmem:[%s4 + $0x3c] sm:$0xf] %v1113
  %1242 = vst [vmem:[%s4 + $0x40] sm:$0xf] %v1114
  %1243 = vst [vmem:[%s4 + $0x44] sm:$0xf] %v1115
  %1244 = vst [vmem:[%s4 + $0x48] sm:$0xf] %v1116
  %1245 = vst [vmem:[%s4 + $0x4c] sm:$0xf] %v1117
  %1246 = vst [vmem:[%s4 + $0x50] sm:$0xf] %v1118
  %1247 = vst [vmem:[%s4 + $0x54] sm:$0xf] %v1119
  %1248 = vst [vmem:[%s4 + $0x58] sm:$0xf] %v1120
  %1249 = vst [vmem:[%s4 + $0x5c] sm:$0xf] %v1121
  %1250 = vst [vmem:[%s4 + $0x60] sm:$0xf] %v1122
  %1251 = vst [vmem:[%s4 + $0x64] sm:$0xf] %v1123
  %1252 = vst [vmem:[%s4 + $0x68] sm:$0xf] %v1124
  %1253 = vst [vmem:[%s4 + $0x6c] sm:$0xf] %v1125
  %1254 = vst [vmem:[%s4 + $0x70] sm:$0xf] %v1126
  %1255 = vst [vmem:[%s4 + $0x74] sm:$0xf] %v1127
  %1256 = vst [vmem:[%s4 + $0x78] sm:$0xf] %v1128
  %1257 = vst [vmem:[%s4 + $0x7c] sm:$0xf] %v1129
  %1258 = vst [vmem:[%s4 + $0x80] sm:$0xf] %v1130
  %1259 = vst [vmem:[%s4 + $0x84] sm:$0xf] %v1131
  %1260 = vst [vmem:[%s4 + $0x88] sm:$0xf] %v1132
  %1261 = vst [vmem:[%s4 + $0x8c] sm:$0xf] %v1133
  %1262 = vst [vmem:[%s4 + $0x90] sm:$0xf] %v1134
  %1263 = vst [vmem:[%s4 + $0x94] sm:$0xf] %v1135
  %1264 = vst [vmem:[%s4 + $0x98] sm:$0xf] %v1136
  %1265 = vst [vmem:[%s4 + $0x9c] sm:$0xf] %v1137
  %1266 = vst [vmem:[%s4 + $0xa0] sm:$0xf] %v1138
  %1267 = vst [vmem:[%s4 + $0xa4] sm:$0xf] %v1139
  %1268 = vst [vmem:[%s4 + $0xa8] sm:$0xf] %v1140
  %1269 = vst [vmem:[%s4 + $0xac] sm:$0xf] %v1141
  %1270 = vst [vmem:[%s4 + $0xb0] sm:$0xf] %v1142
  %1271 = vst [vmem:[%s4 + $0xb4] sm:$0xf] %v1143
  %1272 = vst [vmem:[%s4 + $0xb8] sm:$0xf] %v1144
  %1273 = vst [vmem:[%s4 + $0xbc] sm:$0xf] %v1145
  %1274 = vst [vmem:[%s4 + $0xc0] sm:$0xf] %v1146
  %1275 = vst [vmem:[%s4 + $0xc4] sm:$0xf] %v1147
  %1276 = vst [vmem:[%s4 + $0xc8] sm:$0xf] %v1148
  %1277 = vst [vmem:[%s4 + $0xcc] sm:$0xf] %v1149
  %1278 = vst [vmem:[%s4 + $0xd0] sm:$0xf] %v1150
  %1279 = vst [vmem:[%s4 + $0xd4] sm:$0xf] %v1151
  %1280 = vst [vmem:[%s4 + $0xd8] sm:$0xf] %v1152
  %1281 = vst [vmem:[%s4 + $0xdc] sm:$0xf] %v1153
  %1282 = vst [vmem:[%s4 + $0xe0] sm:$0xf] %v1154
  %1283 = vst [vmem:[%s4 + $0xe4] sm:$0xf] %v1155
  %1284 = vst [vmem:[%s4 + $0xe8] sm:$0xf] %v1156
  %1285 = vst [vmem:[%s4 + $0xec] sm:$0xf] %v1157
  %1286 = vst [vmem:[%s4 + $0xf0] sm:$0xf] %v1158
  %1287 = vst [vmem:[%s4 + $0xf4] sm:$0xf] %v1159
  %1288 = vst [vmem:[%s4 + $0xf8] sm:$0xf] %v1160
  %1289 = vst [vmem:[%s4 + $0xfc] sm:$0xf] %v1161
  // Predicated region
  $region18: #{conv_transpose_block.3} parent=0 // pred_check
    _
  $region19: #{conv_transpose_block.3} parent=0 // pred_check_branch
    %1291 = sbr.rel (0) target = $region21
  $region20: #{conv_transpose_block.3} parent=0 // pred_region
    _
  $region21: #{conv_transpose_block.3} parent=0 // pred_fallthru
    _
  // Predicated region
  $region22: #{conv_transpose_block.3} parent=0 // pred_check
    _
  $region23: #{conv_transpose_block.3} parent=0 // pred_check_branch
    %1293 = sbr.rel (0) target = $region25
  $region24: #{conv_transpose_block.3} parent=0 // pred_region
    _
  $region25: #{conv_transpose_block.3} parent=0 // pred_fallthru
    _

</llo_original>
